<compile_context>
chip_gen: v6e
topology: v6e:2x2x1
jax: 0.10.0
libtpu: 0.0.40
codegen_flags: <defaults>
</compile_context>

<pallas_src>
import functools

import jax
import jax.numpy as jnp
import numpy as np
from jax.experimental import pallas as pl
from jax.experimental.pallas import tpu as pltpu

_LANE = 128


def _round_up(x, m):
    return ((x + m - 1) // m) * m


# ------------------------------- Pallas kernel -------------------------------

def _fused_forward_kernel(*refs, num_layers, act_flags):
    """Whole-network forward for one batch element (grid axis 0 = batch).

    refs = [x_ref, (r_ref, t_ref, b_ref) * num_layers, o_ref]
      x_ref : (1, H, W*Cin)           bf16  input image, columns = (w, c), c minor
      r_ref : (KH, Ho, Hin)           bf16  0/1 row-gather (zero-pad folded in)
      t_ref : (KH, Win*Cin, Wo*Cout)  bf16  Toeplitz weights for kernel row i
      b_ref : (1, Wo*Cout)            f32   bias tiled over wo (zeros for the head)
      o_ref : (1, 1, c_pad)           f32   lane-dense padded logits
    """
    x_ref = refs[0]
    o_ref = refs[-1]
    layer_refs = refs[1:-1]

    act = x_ref[0]                                     # (H, W*Cin) bf16
    for l in range(num_layers):
        r_ref, t_ref, b_ref = layer_refs[3 * l:3 * l + 3]
        acc = jnp.zeros((r_ref.shape[1], t_ref.shape[2]), jnp.float32)
        for i in range(r_ref.shape[0]):                # kernel rows (unrolled)
            rows = jnp.dot(r_ref[i], act, preferred_element_type=jnp.float32)
            rows = rows.astype(jnp.bfloat16)           # exact: pure 0/1 gather
            acc = acc + jnp.dot(rows, t_ref[i],
                                preferred_element_type=jnp.float32)
        acc = acc + b_ref[...]                         # bias in f32
        if act_flags[l]:
            acc = jnp.where(acc > 0, acc, 0.01 * acc)  # LeakyReLU(0.01)
            act = acc.astype(jnp.bfloat16)             # next layer input (bf16)
        else:
            act = acc                                  # head output stays f32

    o_ref[0] = act.astype(o_ref.dtype)                 # (1, c_pad) lane-dense


# --------------------------- operand construction -----------------------------

def _conv_layer_operands(w_oihw, bias, h, w, stride, pad, cout_pad=None):
    """Conv2d(stride, pad) as MXU-only operands: row-gather R + Toeplitz T + bias row."""
    wt = np.asarray(w_oihw, np.float32)
    cout, cin, kh, kw = wt.shape
    ho = (h + 2 * pad - kh) // stride + 1
    wo = (w + 2 * pad - kw) // stride + 1
    n = cout if cout_pad is None else cout_pad

    R = np.zeros((kh, ho, h), np.float32)
    for i in range(kh):
        for oh in range(ho):
            r = stride * oh + i - pad
            if 0 <= r < h:
                R[i, oh, r] = 1.0

    T = np.zeros((kh, w * cin, wo * n), np.float32)
    for i in range(kh):
        for ow in range(wo):
            for j in range(kw):
                c = stride * ow + j - pad
                if 0 <= c < w:
                    T[i, c * cin:(c + 1) * cin, ow * n:ow * n + cout] = wt[:, :, i, j].T

    brow = np.zeros((1, wo * n), np.float32)
    if bias is not None:
        b = np.asarray(bias, np.float32)
        for ow in range(wo):
            brow[0, ow * n:ow * n + cout] = b

    return (jnp.asarray(R, jnp.bfloat16), jnp.asarray(T, jnp.bfloat16),
            jnp.asarray(brow, jnp.float32), ho, wo, n)


# -------------------------------- model setup ---------------------------------

def init_params(key, frame_shape, conv_dim, c_dim, repeat_num):
    """Synthetic init matching the PyTorch module's shapes (curr_dim stays conv_dim)."""
    params = {"convs": []}
    in_c = 3
    for _ in range(repeat_num):
        key, k_w, k_b = jax.random.split(key, 3)
        w = jax.random.normal(k_w, (conv_dim, in_c, 4, 4), jnp.float32) * 0.05
        b = jax.random.normal(k_b, (conv_dim,), jnp.float32) * 0.05
        params["convs"].append((w, b))
        in_c = conv_dim
    k_last = int(frame_shape / np.power(2, repeat_num))
    key, k_w = jax.random.split(key)
    params["last_w"] = jax.random.normal(
        k_w, (c_dim, conv_dim, k_last, k_last), jnp.float32) * 0.05
    return params


def prepare_kernel_params(params, frame_shape):
    """Hoisted layout plumbing: bf16 row-gather / Toeplitz operands per layer."""
    layers = []
    h = w = frame_shape
    for (wt, b) in params["convs"]:
        R, T, brow, h, w, _ = _conv_layer_operands(wt, b, h, w, stride=2, pad=1)
        layers.append((R, T, brow))

    c_dim = params["last_w"].shape[0]
    c_pad = _round_up(c_dim, _LANE)
    R, T, brow, ho, wo, _ = _conv_layer_operands(
        params["last_w"], None, h, w, stride=1, pad=0, cout_pad=c_pad)
    assert (ho, wo) == (1, 1), "head kernel must cover the remaining spatial extent"
    layers.append((R, T, brow))

    act_flags = tuple([True] * len(params["convs"]) + [False])
    return {"layers": layers, "act_flags": act_flags, "c_dim": c_dim, "c_pad": c_pad}


# ---------------------------------- forward -----------------------------------

def discriminator_forward(x_nchw, kparams):
    """net='classfier': stack of (conv4x4 s2 p1 + LeakyReLU) then bias-free conv head."""
    n, c, h, w = x_nchw.shape
    x2d = jnp.transpose(x_nchw, (0, 2, 3, 1)).reshape(n, h, w * c)
    x2d = x2d.astype(jnp.bfloat16)

    layers = kparams["layers"]
    c_pad = kparams["c_pad"]

    in_specs = [pl.BlockSpec((1, h, w * c), lambda b: (b, 0, 0))]
    args = [x2d]
    for (R, T, brow) in layers:
        in_specs += [pl.BlockSpec(R.shape, lambda b: (0, 0, 0)),
                     pl.BlockSpec(T.shape, lambda b: (0, 0, 0)),
                     pl.BlockSpec(brow.shape, lambda b: (0, 0))]
        args += [R, T, brow]

    kernel = functools.partial(_fused_forward_kernel,
                               num_layers=len(layers),
                               act_flags=kparams["act_flags"])

    out = pl.pallas_call(
        kernel,
        out_shape=jax.ShapeDtypeStruct((n, 1, c_pad), jnp.float32),
        grid=(n,),
        in_specs=in_specs,
        out_specs=pl.BlockSpec((1, 1, c_pad), lambda b: (b, 0, 0)),
        compiler_params=pltpu.CompilerParams(
            dimension_semantics=("parallel",),
            vmem_limit_bytes=32 * 1024 * 1024,
        ),
    )(*args)
    return out.reshape(n, c_pad)[:, :kparams["c_dim"]]


# ----------------------------- pure-JAX reference ------------------------------

def reference_forward(x_nchw, params):
    """Same math (bf16 operands, f32 accumulation) via lax.conv."""
    out = x_nchw
    for (w, b) in params["convs"]:
        out = jax.lax.conv_general_dilated(
            out.astype(jnp.bfloat16), w.astype(jnp.bfloat16),
            window_strides=(2, 2), padding=((1, 1), (1, 1)),
            dimension_numbers=("NCHW", "OIHW", "NCHW"),
            preferred_element_type=jnp.float32)
        out = out + b[None, :, None, None]
        out = jnp.where(out > 0, out, 0.01 * out)
    out = jax.lax.conv_general_dilated(
        out.astype(jnp.bfloat16), params["last_w"].astype(jnp.bfloat16),
        window_strides=(1, 1), padding="VALID",
        dimension_numbers=("NCHW", "OIHW", "NCHW"),
        preferred_element_type=jnp.float32)
    return out.reshape(out.shape[0], out.shape[1])


# ------------------------------------ main -------------------------------------

if __name__ == "__main__":
    # Small config consistent with the module: frame_shape=16, repeat_num=2
    # => 16 -> 8 -> 4 spatial, last_conv kernel_size = 16 / 2^2 = 4.
    batch, frame_shape, conv_dim, c_dim, repeat_num = 2, 16, 8, 5, 2

    key = jax.random.PRNGKey(0)
    key, kx = jax.random.split(key)
    x = jax.random.normal(kx, (batch, 3, frame_shape, frame_shape), jnp.float32)

    params = init_params(key, frame_shape, conv_dim, c_dim, repeat_num)
    kparams = prepare_kernel_params(params, frame_shape)   # hoisted out of forward

    fwd = jax.jit(lambda inp: discriminator_forward(inp, kparams))
    out = jax.block_until_ready(fwd(x))

    ref = jax.block_until_ready(reference_forward(x, params))

    assert out.shape == (batch, c_dim), out.shape
    np.testing.assert_allclose(
        np.asarray(out, np.float32), np.asarray(ref, np.float32),
        rtol=2e-2, atol=2e-2)

    print("KERNEL_OK")
</pallas_src>

<mosaic_0001>
module attributes {stable_mosaic.version = 11 : i64} {
  func.func @_fused_forward_kernel(%arg0: i32, %arg1: memref<1x16x48xbf16, #tpu.memory_space<vmem>>, %arg2: memref<4x8x16xbf16, #tpu.memory_space<vmem>>, %arg3: memref<4x48x64xbf16, #tpu.memory_space<vmem>>, %arg4: memref<1x64xf32, #tpu.memory_space<vmem>>, %arg5: memref<4x4x8xbf16, #tpu.memory_space<vmem>>, %arg6: memref<4x64x32xbf16, #tpu.memory_space<vmem>>, %arg7: memref<1x32xf32, #tpu.memory_space<vmem>>, %arg8: memref<4x1x4xbf16, #tpu.memory_space<vmem>>, %arg9: memref<4x32x128xbf16, #tpu.memory_space<vmem>>, %arg10: memref<1x128xf32, #tpu.memory_space<vmem>>, %arg11: memref<1x1x128xf32, #tpu.memory_space<vmem>>) attributes {dimension_semantics = [#tpu.dimension_semantics<parallel>], iteration_bounds = array<i64: 2>, scalar_prefetch = 0 : i64, scratch_operands = 0 : i64, tpu.core_type = #tpu.core_type<tc>, window_params = [{transform_indices = @transform_0, window_bounds = array<i64: 1, 16, 48>}, {pipeline_mode = #tpu.pipeline_mode<synchronous>, transform_indices = @transform_1, window_bounds = array<i64: 4, 8, 16>}, {pipeline_mode = #tpu.pipeline_mode<synchronous>, transform_indices = @transform_2, window_bounds = array<i64: 4, 48, 64>}, {pipeline_mode = #tpu.pipeline_mode<synchronous>, transform_indices = @transform_3, window_bounds = array<i64: 1, 64>}, {pipeline_mode = #tpu.pipeline_mode<synchronous>, transform_indices = @transform_4, window_bounds = array<i64: 4, 4, 8>}, {pipeline_mode = #tpu.pipeline_mode<synchronous>, transform_indices = @transform_5, window_bounds = array<i64: 4, 64, 32>}, {pipeline_mode = #tpu.pipeline_mode<synchronous>, transform_indices = @transform_6, window_bounds = array<i64: 1, 32>}, {pipeline_mode = #tpu.pipeline_mode<synchronous>, transform_indices = @transform_7, window_bounds = array<i64: 4, 1, 4>}, {pipeline_mode = #tpu.pipeline_mode<synchronous>, transform_indices = @transform_8, window_bounds = array<i64: 4, 32, 128>}, {pipeline_mode = #tpu.pipeline_mode<synchronous>, transform_indices = @transform_9, window_bounds = array<i64: 1, 128>}, {transform_indices = @transform_10, window_bounds = array<i64: 1, 1, 128>}]} {
    %c0 = arith.constant 0 : index
    %c0_0 = arith.constant 0 : index
    %c0_1 = arith.constant 0 : index
    %0 = vector.load %arg1[%c0, %c0_0, %c0_1] : memref<1x16x48xbf16, #tpu.memory_space<vmem>>, vector<1x16x48xbf16>
    %1 = vector.shape_cast %0 : vector<1x16x48xbf16> to vector<16x48xbf16>
    %cst = arith.constant 0.000000e+00 : f32
    %2 = vector.broadcast %cst : f32 to vector<8x64xf32>
    %c0_2 = arith.constant 0 : index
    %c0_3 = arith.constant 0 : index
    %c0_4 = arith.constant 0 : index
    %3 = vector.load %arg2[%c0_2, %c0_3, %c0_4] : memref<4x8x16xbf16, #tpu.memory_space<vmem>>, vector<1x8x16xbf16>
    %4 = vector.shape_cast %3 : vector<1x8x16xbf16> to vector<8x16xbf16>
    %cst_5 = arith.constant dense<0.000000e+00> : vector<8x48xf32>
    %5 = tpu.matmul %4, %1, %cst_5 {dimension_numbers = #tpu.dot_dimension_numbers<[1], [0], [0], [1], [0, 0, 1, 1], [], []>} : vector<8x16xbf16>, vector<16x48xbf16>, vector<8x48xf32> -> vector<8x48xf32>
    %6 = arith.truncf %5 : vector<8x48xf32> to vector<8x48xbf16>
    %c0_6 = arith.constant 0 : index
    %c0_7 = arith.constant 0 : index
    %c0_8 = arith.constant 0 : index
    %7 = vector.load %arg3[%c0_6, %c0_7, %c0_8] : memref<4x48x64xbf16, #tpu.memory_space<vmem>>, vector<1x48x64xbf16>
    %8 = vector.shape_cast %7 : vector<1x48x64xbf16> to vector<48x64xbf16>
    %cst_9 = arith.constant dense<0.000000e+00> : vector<8x64xf32>
    %9 = tpu.matmul %6, %8, %cst_9 {dimension_numbers = #tpu.dot_dimension_numbers<[1], [0], [0], [1], [0, 0, 1, 1], [], []>} : vector<8x48xbf16>, vector<48x64xbf16>, vector<8x64xf32> -> vector<8x64xf32>
    %10 = arith.addf %2, %9 : vector<8x64xf32>
    %c1 = arith.constant 1 : index
    %c0_10 = arith.constant 0 : index
    %c0_11 = arith.constant 0 : index
    %11 = vector.load %arg2[%c1, %c0_10, %c0_11] : memref<4x8x16xbf16, #tpu.memory_space<vmem>>, vector<1x8x16xbf16>
    %12 = vector.shape_cast %11 : vector<1x8x16xbf16> to vector<8x16xbf16>
    %cst_12 = arith.constant dense<0.000000e+00> : vector<8x48xf32>
    %13 = tpu.matmul %12, %1, %cst_12 {dimension_numbers = #tpu.dot_dimension_numbers<[1], [0], [0], [1], [0, 0, 1, 1], [], []>} : vector<8x16xbf16>, vector<16x48xbf16>, vector<8x48xf32> -> vector<8x48xf32>
    %14 = arith.truncf %13 : vector<8x48xf32> to vector<8x48xbf16>
    %c1_13 = arith.constant 1 : index
    %c0_14 = arith.constant 0 : index
    %c0_15 = arith.constant 0 : index
    %15 = vector.load %arg3[%c1_13, %c0_14, %c0_15] : memref<4x48x64xbf16, #tpu.memory_space<vmem>>, vector<1x48x64xbf16>
    %16 = vector.shape_cast %15 : vector<1x48x64xbf16> to vector<48x64xbf16>
    %cst_16 = arith.constant dense<0.000000e+00> : vector<8x64xf32>
    %17 = tpu.matmul %14, %16, %cst_16 {dimension_numbers = #tpu.dot_dimension_numbers<[1], [0], [0], [1], [0, 0, 1, 1], [], []>} : vector<8x48xbf16>, vector<48x64xbf16>, vector<8x64xf32> -> vector<8x64xf32>
    %18 = arith.addf %10, %17 : vector<8x64xf32>
    %c2 = arith.constant 2 : index
    %c0_17 = arith.constant 0 : index
    %c0_18 = arith.constant 0 : index
    %19 = vector.load %arg2[%c2, %c0_17, %c0_18] : memref<4x8x16xbf16, #tpu.memory_space<vmem>>, vector<1x8x16xbf16>
    %20 = vector.shape_cast %19 : vector<1x8x16xbf16> to vector<8x16xbf16>
    %cst_19 = arith.constant dense<0.000000e+00> : vector<8x48xf32>
    %21 = tpu.matmul %20, %1, %cst_19 {dimension_numbers = #tpu.dot_dimension_numbers<[1], [0], [0], [1], [0, 0, 1, 1], [], []>} : vector<8x16xbf16>, vector<16x48xbf16>, vector<8x48xf32> -> vector<8x48xf32>
    %22 = arith.truncf %21 : vector<8x48xf32> to vector<8x48xbf16>
    %c2_20 = arith.constant 2 : index
    %c0_21 = arith.constant 0 : index
    %c0_22 = arith.constant 0 : index
    %23 = vector.load %arg3[%c2_20, %c0_21, %c0_22] : memref<4x48x64xbf16, #tpu.memory_space<vmem>>, vector<1x48x64xbf16>
    %24 = vector.shape_cast %23 : vector<1x48x64xbf16> to vector<48x64xbf16>
    %cst_23 = arith.constant dense<0.000000e+00> : vector<8x64xf32>
    %25 = tpu.matmul %22, %24, %cst_23 {dimension_numbers = #tpu.dot_dimension_numbers<[1], [0], [0], [1], [0, 0, 1, 1], [], []>} : vector<8x48xbf16>, vector<48x64xbf16>, vector<8x64xf32> -> vector<8x64xf32>
    %26 = arith.addf %18, %25 : vector<8x64xf32>
    %c3 = arith.constant 3 : index
    %c0_24 = arith.constant 0 : index
    %c0_25 = arith.constant 0 : index
    %27 = vector.load %arg2[%c3, %c0_24, %c0_25] : memref<4x8x16xbf16, #tpu.memory_space<vmem>>, vector<1x8x16xbf16>
    %28 = vector.shape_cast %27 : vector<1x8x16xbf16> to vector<8x16xbf16>
    %cst_26 = arith.constant dense<0.000000e+00> : vector<8x48xf32>
    %29 = tpu.matmul %28, %1, %cst_26 {dimension_numbers = #tpu.dot_dimension_numbers<[1], [0], [0], [1], [0, 0, 1, 1], [], []>} : vector<8x16xbf16>, vector<16x48xbf16>, vector<8x48xf32> -> vector<8x48xf32>
    %30 = arith.truncf %29 : vector<8x48xf32> to vector<8x48xbf16>
    %c3_27 = arith.constant 3 : index
    %c0_28 = arith.constant 0 : index
    %c0_29 = arith.constant 0 : index
    %31 = vector.load %arg3[%c3_27, %c0_28, %c0_29] : memref<4x48x64xbf16, #tpu.memory_space<vmem>>, vector<1x48x64xbf16>
    %32 = vector.shape_cast %31 : vector<1x48x64xbf16> to vector<48x64xbf16>
    %cst_30 = arith.constant dense<0.000000e+00> : vector<8x64xf32>
    %33 = tpu.matmul %30, %32, %cst_30 {dimension_numbers = #tpu.dot_dimension_numbers<[1], [0], [0], [1], [0, 0, 1, 1], [], []>} : vector<8x48xbf16>, vector<48x64xbf16>, vector<8x64xf32> -> vector<8x64xf32>
    %34 = arith.addf %26, %33 : vector<8x64xf32>
    %c0_31 = arith.constant 0 : index
    %c0_32 = arith.constant 0 : index
    %35 = vector.load %arg4[%c0_31, %c0_32] : memref<1x64xf32, #tpu.memory_space<vmem>>, vector<1x64xf32>
    %36 = vector.broadcast %35 : vector<1x64xf32> to vector<8x64xf32>
    %37 = arith.addf %34, %36 : vector<8x64xf32>
    %cst_33 = arith.constant 0.000000e+00 : f32
    %38 = vector.broadcast %cst_33 : f32 to vector<8x64xf32>
    %39 = arith.cmpf ogt, %37, %38 : vector<8x64xf32>
    %cst_34 = arith.constant 0.00999999977 : f32
    %40 = vector.broadcast %cst_34 : f32 to vector<8x64xf32>
    %41 = arith.mulf %40, %37 : vector<8x64xf32>
    %42 = arith.select %39, %37, %41 : vector<8x64xi1>, vector<8x64xf32>
    %43 = arith.truncf %42 : vector<8x64xf32> to vector<8x64xbf16>
    %cst_35 = arith.constant 0.000000e+00 : f32
    %44 = vector.broadcast %cst_35 : f32 to vector<4x32xf32>
    %c0_36 = arith.constant 0 : index
    %c0_37 = arith.constant 0 : index
    %c0_38 = arith.constant 0 : index
    %45 = vector.load %arg5[%c0_36, %c0_37, %c0_38] : memref<4x4x8xbf16, #tpu.memory_space<vmem>>, vector<1x4x8xbf16>
    %46 = vector.shape_cast %45 : vector<1x4x8xbf16> to vector<4x8xbf16>
    %cst_39 = arith.constant dense<0.000000e+00> : vector<4x64xf32>
    %47 = tpu.matmul %46, %43, %cst_39 {dimension_numbers = #tpu.dot_dimension_numbers<[1], [0], [0], [1], [0, 0, 1, 1], [], []>} : vector<4x8xbf16>, vector<8x64xbf16>, vector<4x64xf32> -> vector<4x64xf32>
    %48 = arith.truncf %47 : vector<4x64xf32> to vector<4x64xbf16>
    %c0_40 = arith.constant 0 : index
    %c0_41 = arith.constant 0 : index
    %c0_42 = arith.constant 0 : index
    %49 = vector.load %arg6[%c0_40, %c0_41, %c0_42] : memref<4x64x32xbf16, #tpu.memory_space<vmem>>, vector<1x64x32xbf16>
    %50 = vector.shape_cast %49 : vector<1x64x32xbf16> to vector<64x32xbf16>
    %cst_43 = arith.constant dense<0.000000e+00> : vector<4x32xf32>
    %51 = tpu.matmul %48, %50, %cst_43 {dimension_numbers = #tpu.dot_dimension_numbers<[1], [0], [0], [1], [0, 0, 1, 1], [], []>} : vector<4x64xbf16>, vector<64x32xbf16>, vector<4x32xf32> -> vector<4x32xf32>
    %52 = arith.addf %44, %51 : vector<4x32xf32>
    %c1_44 = arith.constant 1 : index
    %c0_45 = arith.constant 0 : index
    %c0_46 = arith.constant 0 : index
    %53 = vector.load %arg5[%c1_44, %c0_45, %c0_46] : memref<4x4x8xbf16, #tpu.memory_space<vmem>>, vector<1x4x8xbf16>
    %54 = vector.shape_cast %53 : vector<1x4x8xbf16> to vector<4x8xbf16>
    %cst_47 = arith.constant dense<0.000000e+00> : vector<4x64xf32>
    %55 = tpu.matmul %54, %43, %cst_47 {dimension_numbers = #tpu.dot_dimension_numbers<[1], [0], [0], [1], [0, 0, 1, 1], [], []>} : vector<4x8xbf16>, vector<8x64xbf16>, vector<4x64xf32> -> vector<4x64xf32>
    %56 = arith.truncf %55 : vector<4x64xf32> to vector<4x64xbf16>
    %c1_48 = arith.constant 1 : index
    %c0_49 = arith.constant 0 : index
    %c0_50 = arith.constant 0 : index
    %57 = vector.load %arg6[%c1_48, %c0_49, %c0_50] : memref<4x64x32xbf16, #tpu.memory_space<vmem>>, vector<1x64x32xbf16>
    %58 = vector.shape_cast %57 : vector<1x64x32xbf16> to vector<64x32xbf16>
    %cst_51 = arith.constant dense<0.000000e+00> : vector<4x32xf32>
    %59 = tpu.matmul %56, %58, %cst_51 {dimension_numbers = #tpu.dot_dimension_numbers<[1], [0], [0], [1], [0, 0, 1, 1], [], []>} : vector<4x64xbf16>, vector<64x32xbf16>, vector<4x32xf32> -> vector<4x32xf32>
    %60 = arith.addf %52, %59 : vector<4x32xf32>
    %c2_52 = arith.constant 2 : index
    %c0_53 = arith.constant 0 : index
    %c0_54 = arith.constant 0 : index
    %61 = vector.load %arg5[%c2_52, %c0_53, %c0_54] : memref<4x4x8xbf16, #tpu.memory_space<vmem>>, vector<1x4x8xbf16>
    %62 = vector.shape_cast %61 : vector<1x4x8xbf16> to vector<4x8xbf16>
    %cst_55 = arith.constant dense<0.000000e+00> : vector<4x64xf32>
    %63 = tpu.matmul %62, %43, %cst_55 {dimension_numbers = #tpu.dot_dimension_numbers<[1], [0], [0], [1], [0, 0, 1, 1], [], []>} : vector<4x8xbf16>, vector<8x64xbf16>, vector<4x64xf32> -> vector<4x64xf32>
    %64 = arith.truncf %63 : vector<4x64xf32> to vector<4x64xbf16>
    %c2_56 = arith.constant 2 : index
    %c0_57 = arith.constant 0 : index
    %c0_58 = arith.constant 0 : index
    %65 = vector.load %arg6[%c2_56, %c0_57, %c0_58] : memref<4x64x32xbf16, #tpu.memory_space<vmem>>, vector<1x64x32xbf16>
    %66 = vector.shape_cast %65 : vector<1x64x32xbf16> to vector<64x32xbf16>
    %cst_59 = arith.constant dense<0.000000e+00> : vector<4x32xf32>
    %67 = tpu.matmul %64, %66, %cst_59 {dimension_numbers = #tpu.dot_dimension_numbers<[1], [0], [0], [1], [0, 0, 1, 1], [], []>} : vector<4x64xbf16>, vector<64x32xbf16>, vector<4x32xf32> -> vector<4x32xf32>
    %68 = arith.addf %60, %67 : vector<4x32xf32>
    %c3_60 = arith.constant 3 : index
    %c0_61 = arith.constant 0 : index
    %c0_62 = arith.constant 0 : index
    %69 = vector.load %arg5[%c3_60, %c0_61, %c0_62] : memref<4x4x8xbf16, #tpu.memory_space<vmem>>, vector<1x4x8xbf16>
    %70 = vector.shape_cast %69 : vector<1x4x8xbf16> to vector<4x8xbf16>
    %cst_63 = arith.constant dense<0.000000e+00> : vector<4x64xf32>
    %71 = tpu.matmul %70, %43, %cst_63 {dimension_numbers = #tpu.dot_dimension_numbers<[1], [0], [0], [1], [0, 0, 1, 1], [], []>} : vector<4x8xbf16>, vector<8x64xbf16>, vector<4x64xf32> -> vector<4x64xf32>
    %72 = arith.truncf %71 : vector<4x64xf32> to vector<4x64xbf16>
    %c3_64 = arith.constant 3 : index
    %c0_65 = arith.constant 0 : index
    %c0_66 = arith.constant 0 : index
    %73 = vector.load %arg6[%c3_64, %c0_65, %c0_66] : memref<4x64x32xbf16, #tpu.memory_space<vmem>>, vector<1x64x32xbf16>
    %74 = vector.shape_cast %73 : vector<1x64x32xbf16> to vector<64x32xbf16>
    %cst_67 = arith.constant dense<0.000000e+00> : vector<4x32xf32>
    %75 = tpu.matmul %72, %74, %cst_67 {dimension_numbers = #tpu.dot_dimension_numbers<[1], [0], [0], [1], [0, 0, 1, 1], [], []>} : vector<4x64xbf16>, vector<64x32xbf16>, vector<4x32xf32> -> vector<4x32xf32>
    %76 = arith.addf %68, %75 : vector<4x32xf32>
    %c0_68 = arith.constant 0 : index
    %c0_69 = arith.constant 0 : index
    %77 = vector.load %arg7[%c0_68, %c0_69] : memref<1x32xf32, #tpu.memory_space<vmem>>, vector<1x32xf32>
    %78 = vector.broadcast %77 : vector<1x32xf32> to vector<4x32xf32>
    %79 = arith.addf %76, %78 : vector<4x32xf32>
    %cst_70 = arith.constant 0.000000e+00 : f32
    %80 = vector.broadcast %cst_70 : f32 to vector<4x32xf32>
    %81 = arith.cmpf ogt, %79, %80 : vector<4x32xf32>
    %cst_71 = arith.constant 0.00999999977 : f32
    %82 = vector.broadcast %cst_71 : f32 to vector<4x32xf32>
    %83 = arith.mulf %82, %79 : vector<4x32xf32>
    %84 = arith.select %81, %79, %83 : vector<4x32xi1>, vector<4x32xf32>
    %85 = arith.truncf %84 : vector<4x32xf32> to vector<4x32xbf16>
    %cst_72 = arith.constant 0.000000e+00 : f32
    %86 = vector.broadcast %cst_72 : f32 to vector<1x128xf32>
    %c0_73 = arith.constant 0 : index
    %c0_74 = arith.constant 0 : index
    %c0_75 = arith.constant 0 : index
    %87 = vector.load %arg8[%c0_73, %c0_74, %c0_75] : memref<4x1x4xbf16, #tpu.memory_space<vmem>>, vector<1x1x4xbf16>
    %88 = vector.shape_cast %87 : vector<1x1x4xbf16> to vector<1x4xbf16>
    %cst_76 = arith.constant dense<0.000000e+00> : vector<1x32xf32>
    %89 = tpu.matmul %88, %85, %cst_76 {dimension_numbers = #tpu.dot_dimension_numbers<[1], [0], [0], [1], [0, 0, 1, 1], [], []>} : vector<1x4xbf16>, vector<4x32xbf16>, vector<1x32xf32> -> vector<1x32xf32>
    %90 = arith.truncf %89 : vector<1x32xf32> to vector<1x32xbf16>
    %c0_77 = arith.constant 0 : index
    %c0_78 = arith.constant 0 : index
    %c0_79 = arith.constant 0 : index
    %91 = vector.load %arg9[%c0_77, %c0_78, %c0_79] : memref<4x32x128xbf16, #tpu.memory_space<vmem>>, vector<1x32x128xbf16>
    %92 = vector.shape_cast %91 : vector<1x32x128xbf16> to vector<32x128xbf16>
    %cst_80 = arith.constant dense<0.000000e+00> : vector<1x128xf32>
    %93 = tpu.matmul %90, %92, %cst_80 {dimension_numbers = #tpu.dot_dimension_numbers<[1], [0], [0], [1], [0, 0, 1, 1], [], []>} : vector<1x32xbf16>, vector<32x128xbf16>, vector<1x128xf32> -> vector<1x128xf32>
    %94 = arith.addf %86, %93 : vector<1x128xf32>
    %c1_81 = arith.constant 1 : index
    %c0_82 = arith.constant 0 : index
    %c0_83 = arith.constant 0 : index
    %95 = vector.load %arg8[%c1_81, %c0_82, %c0_83] : memref<4x1x4xbf16, #tpu.memory_space<vmem>>, vector<1x1x4xbf16>
    %96 = vector.shape_cast %95 : vector<1x1x4xbf16> to vector<1x4xbf16>
    %cst_84 = arith.constant dense<0.000000e+00> : vector<1x32xf32>
    %97 = tpu.matmul %96, %85, %cst_84 {dimension_numbers = #tpu.dot_dimension_numbers<[1], [0], [0], [1], [0, 0, 1, 1], [], []>} : vector<1x4xbf16>, vector<4x32xbf16>, vector<1x32xf32> -> vector<1x32xf32>
    %98 = arith.truncf %97 : vector<1x32xf32> to vector<1x32xbf16>
    %c1_85 = arith.constant 1 : index
    %c0_86 = arith.constant 0 : index
    %c0_87 = arith.constant 0 : index
    %99 = vector.load %arg9[%c1_85, %c0_86, %c0_87] : memref<4x32x128xbf16, #tpu.memory_space<vmem>>, vector<1x32x128xbf16>
    %100 = vector.shape_cast %99 : vector<1x32x128xbf16> to vector<32x128xbf16>
    %cst_88 = arith.constant dense<0.000000e+00> : vector<1x128xf32>
    %101 = tpu.matmul %98, %100, %cst_88 {dimension_numbers = #tpu.dot_dimension_numbers<[1], [0], [0], [1], [0, 0, 1, 1], [], []>} : vector<1x32xbf16>, vector<32x128xbf16>, vector<1x128xf32> -> vector<1x128xf32>
    %102 = arith.addf %94, %101 : vector<1x128xf32>
    %c2_89 = arith.constant 2 : index
    %c0_90 = arith.constant 0 : index
    %c0_91 = arith.constant 0 : index
    %103 = vector.load %arg8[%c2_89, %c0_90, %c0_91] : memref<4x1x4xbf16, #tpu.memory_space<vmem>>, vector<1x1x4xbf16>
    %104 = vector.shape_cast %103 : vector<1x1x4xbf16> to vector<1x4xbf16>
    %cst_92 = arith.constant dense<0.000000e+00> : vector<1x32xf32>
    %105 = tpu.matmul %104, %85, %cst_92 {dimension_numbers = #tpu.dot_dimension_numbers<[1], [0], [0], [1], [0, 0, 1, 1], [], []>} : vector<1x4xbf16>, vector<4x32xbf16>, vector<1x32xf32> -> vector<1x32xf32>
    %106 = arith.truncf %105 : vector<1x32xf32> to vector<1x32xbf16>
    %c2_93 = arith.constant 2 : index
    %c0_94 = arith.constant 0 : index
    %c0_95 = arith.constant 0 : index
    %107 = vector.load %arg9[%c2_93, %c0_94, %c0_95] : memref<4x32x128xbf16, #tpu.memory_space<vmem>>, vector<1x32x128xbf16>
    %108 = vector.shape_cast %107 : vector<1x32x128xbf16> to vector<32x128xbf16>
    %cst_96 = arith.constant dense<0.000000e+00> : vector<1x128xf32>
    %109 = tpu.matmul %106, %108, %cst_96 {dimension_numbers = #tpu.dot_dimension_numbers<[1], [0], [0], [1], [0, 0, 1, 1], [], []>} : vector<1x32xbf16>, vector<32x128xbf16>, vector<1x128xf32> -> vector<1x128xf32>
    %110 = arith.addf %102, %109 : vector<1x128xf32>
    %c3_97 = arith.constant 3 : index
    %c0_98 = arith.constant 0 : index
    %c0_99 = arith.constant 0 : index
    %111 = vector.load %arg8[%c3_97, %c0_98, %c0_99] : memref<4x1x4xbf16, #tpu.memory_space<vmem>>, vector<1x1x4xbf16>
    %112 = vector.shape_cast %111 : vector<1x1x4xbf16> to vector<1x4xbf16>
    %cst_100 = arith.constant dense<0.000000e+00> : vector<1x32xf32>
    %113 = tpu.matmul %112, %85, %cst_100 {dimension_numbers = #tpu.dot_dimension_numbers<[1], [0], [0], [1], [0, 0, 1, 1], [], []>} : vector<1x4xbf16>, vector<4x32xbf16>, vector<1x32xf32> -> vector<1x32xf32>
    %114 = arith.truncf %113 : vector<1x32xf32> to vector<1x32xbf16>
    %c3_101 = arith.constant 3 : index
    %c0_102 = arith.constant 0 : index
    %c0_103 = arith.constant 0 : index
    %115 = vector.load %arg9[%c3_101, %c0_102, %c0_103] : memref<4x32x128xbf16, #tpu.memory_space<vmem>>, vector<1x32x128xbf16>
    %116 = vector.shape_cast %115 : vector<1x32x128xbf16> to vector<32x128xbf16>
    %cst_104 = arith.constant dense<0.000000e+00> : vector<1x128xf32>
    %117 = tpu.matmul %114, %116, %cst_104 {dimension_numbers = #tpu.dot_dimension_numbers<[1], [0], [0], [1], [0, 0, 1, 1], [], []>} : vector<1x32xbf16>, vector<32x128xbf16>, vector<1x128xf32> -> vector<1x128xf32>
    %118 = arith.addf %110, %117 : vector<1x128xf32>
    %c0_105 = arith.constant 0 : index
    %c0_106 = arith.constant 0 : index
    %119 = vector.load %arg10[%c0_105, %c0_106] : memref<1x128xf32, #tpu.memory_space<vmem>>, vector<1x128xf32>
    %120 = arith.addf %118, %119 : vector<1x128xf32>
    %c0_107 = arith.constant 0 : index
    %c0_108 = arith.constant 0 : index
    %c0_109 = arith.constant 0 : index
    %121 = vector.load %arg11[%c0_107, %c0_108, %c0_109] : memref<1x1x128xf32, #tpu.memory_space<vmem>>, vector<1x1x128xf32>
    %122 = vector.shape_cast %121 : vector<1x1x128xf32> to vector<1x128xf32>
    %123 = vector.shape_cast %120 : vector<1x128xf32> to vector<1x1x128xf32>
    tpu.vector_store %arg11[%c0_107, %c0_108, %c0_109], %123 {strides = array<i32>} : memref<1x1x128xf32, #tpu.memory_space<vmem>>, vector<1x1x128xf32>,
    return
  }
  func.func @transform_0(%arg0: i32) -> (i32, i32, i32) {
    %c0_i32 = arith.constant 0 : i32
    %c0_i32_0 = arith.constant 0 : i32
    %c0_i32_1 = arith.constant 0 : i32
    return %arg0, %c0_i32, %c0_i32_0 : i32, i32, i32
  }
  func.func @transform_1(%arg0: i32) -> (i32, i32, i32) {
    %c0_i32 = arith.constant 0 : i32
    %c0_i32_0 = arith.constant 0 : i32
    %c0_i32_1 = arith.constant 0 : i32
    %c0_i32_2 = arith.constant 0 : i32
    return %c0_i32, %c0_i32_0, %c0_i32_1 : i32, i32, i32
  }
  func.func @transform_2(%arg0: i32) -> (i32, i32, i32) {
    %c0_i32 = arith.constant 0 : i32
    %c0_i32_0 = arith.constant 0 : i32
    %c0_i32_1 = arith.constant 0 : i32
    %c0_i32_2 = arith.constant 0 : i32
    return %c0_i32, %c0_i32_0, %c0_i32_1 : i32, i32, i32
  }
  func.func @transform_3(%arg0: i32) -> (i32, i32) {
    %c0_i32 = arith.constant 0 : i32
    %c0_i32_0 = arith.constant 0 : i32
    %c0_i32_1 = arith.constant 0 : i32
    return %c0_i32, %c0_i32_0 : i32, i32
  }
  func.func @transform_4(%arg0: i32) -> (i32, i32, i32) {
    %c0_i32 = arith.constant 0 : i32
    %c0_i32_0 = arith.constant 0 : i32
    %c0_i32_1 = arith.constant 0 : i32
    %c0_i32_2 = arith.constant 0 : i32
    return %c0_i32, %c0_i32_0, %c0_i32_1 : i32, i32, i32
  }
  func.func @transform_5(%arg0: i32) -> (i32, i32, i32) {
    %c0_i32 = arith.constant 0 : i32
    %c0_i32_0 = arith.constant 0 : i32
    %c0_i32_1 = arith.constant 0 : i32
    %c0_i32_2 = arith.constant 0 : i32
    return %c0_i32, %c0_i32_0, %c0_i32_1 : i32, i32, i32
  }
  func.func @transform_6(%arg0: i32) -> (i32, i32) {
    %c0_i32 = arith.constant 0 : i32
    %c0_i32_0 = arith.constant 0 : i32
    %c0_i32_1 = arith.constant 0 : i32
    return %c0_i32, %c0_i32_0 : i32, i32
  }
  func.func @transform_7(%arg0: i32) -> (i32, i32, i32) {
    %c0_i32 = arith.constant 0 : i32
    %c0_i32_0 = arith.constant 0 : i32
    %c0_i32_1 = arith.constant 0 : i32
    %c0_i32_2 = arith.constant 0 : i32
    return %c0_i32, %c0_i32_0, %c0_i32_1 : i32, i32, i32
  }
  func.func @transform_8(%arg0: i32) -> (i32, i32, i32) {
    %c0_i32 = arith.constant 0 : i32
    %c0_i32_0 = arith.constant 0 : i32
    %c0_i32_1 = arith.constant 0 : i32
    %c0_i32_2 = arith.constant 0 : i32
    return %c0_i32, %c0_i32_0, %c0_i32_1 : i32, i32, i32
  }
  func.func @transform_9(%arg0: i32) -> (i32, i32) {
    %c0_i32 = arith.constant 0 : i32
    %c0_i32_0 = arith.constant 0 : i32
    %c0_i32_1 = arith.constant 0 : i32
    return %c0_i32, %c0_i32_0 : i32, i32
  }
  func.func @transform_10(%arg0: i32) -> (i32, i32, i32) {
    %c0_i32 = arith.constant 0 : i32
    %c0_i32_0 = arith.constant 0 : i32
    %c0_i32_1 = arith.constant 0 : i32
    return %arg0, %c0_i32, %c0_i32_0 : i32, i32, i32
  }
}

</mosaic_0001>

<llo_original>
// kernel: _lambda_.1
$region0: #{_lambda_.1}
  #allocation0 [shape = 'u32[]', space=smem, size = 0x4, offset = 0x4, fixed_abs, tag = 'smem constant byte address 0x4 - core index']
  #allocation1 [shape = 'u32[144,128]{1,0:T(1,128)}', space=vmem, size = 0x12000, scoped, tag = 'internal scratch']
  %s0 = inlined_call_operand.vmem [shape: bf16[2,16,48], index: 0, kind: input, shape index: {}]
  %s1 = inlined_call_operand.vmem [shape: bf16[4,8,16], index: 1, kind: input, shape index: {}]
  %s2 = inlined_call_operand.vmem [shape: bf16[4,48,64], index: 2, kind: input, shape index: {}]
  %s3 = inlined_call_operand.vmem [shape: f32[1,64], index: 3, kind: input, shape index: {}]
  %s4 = inlined_call_operand.vmem [shape: bf16[4,4,8], index: 4, kind: input, shape index: {}]
  %s5 = inlined_call_operand.vmem [shape: bf16[4,64,32], index: 5, kind: input, shape index: {}]
  %s6 = inlined_call_operand.vmem [shape: f32[1,32], index: 6, kind: input, shape index: {}]
  %s7 = inlined_call_operand.hbm [shape: bf16[4,1,4], index: 7, kind: input, shape index: {}]
  %s8 = inlined_call_operand.vmem [shape: bf16[4,32,128], index: 8, kind: input, shape index: {}]
  %s9 = inlined_call_operand.vmem [shape: f32[1,128], index: 9, kind: input, shape index: {}]
  %s10 = inlined_call_operand.hbm [shape: f32[2,1,128], index: 10, kind: output, shape index: {}]
  %s11 = sld [smem:[#allocation0]]
  $region77: #{_lambda_.1} parent=0
    _
  %s13 = ssub.s32 1, %s11
  %s14 = scalar_select 0, %s13, %s11
  $region1: #{_lambda_.1} parent=0
    #allocation2 [shape = 'u8[2048]{0}', space=vmem, size = 0x800, scoped, tag = 'input window, operand 7, single buffered']
    #allocation3 [shape = 's32[2]{0}', space=sflag, size = 0x8, scoped, tag = 'scoped memory for _lambda_.1']
    #allocation4 [shape = 's32[2]{0}', space=sflag, size = 0x8, scoped, tag = 'scoped memory for _lambda_.1']
    #allocation5 [shape = 'u8[1024]{0}', space=vmem, size = 0x400, scoped, tag = 'output window, operand 0']
    %15 = vsyncpa [#allocation3], 0
    %16 = vsyncpa [#allocation4], 0
    %s17 = scalar_lea.sflag [#allocation4], 1
    %18 = vsyncpa %s17, 0
    loop: start=0, step=1, limit=4
    $region2: #{_lambda_.1} parent=1 // loop_pre_header
      _
    $region3: #{_lambda_.1} parent=1 // loop_header
      %s20 = sphi 0, %s24
      %p21 = scmp.ge.s32.totalorder %s20, 4
      %s30 = sphi 0, %s32
      %s33 = sphi 0, %s30
      %s34 = sphi 0, %s33
      %s50 = sphi 0, %s34
      %s54 = sphi 0, %s54
      %s56 = sphi 0, %s54
      %s57 = sphi 0, %s56
      %s71 = sphi 0, %s57
      %s75 = sphi 0, %s75
      %s77 = sphi 0, %s75
      %s78 = sphi 0, %s77
      %s92 = sphi 0, %s78
      %s96 = sphi 0, %s96
      %s98 = sphi 0, %s96
      %s99 = sphi 0, %s98
      %s113 = sphi 0, %s99
      %s117 = sphi 0, %s117
      %s119 = sphi 0, %s117
      %s120 = sphi 0, %s119
      %s134 = sphi 0, %s120
      %s138 = sphi 0, %s138
      %s140 = sphi 0, %s138
      %s141 = sphi 0, %s140
      %s155 = sphi 0, %s141
      %s159 = sphi 0, %s159
      %s161 = sphi 0, %s159
      %s162 = sphi 0, %s161
      %s176 = sphi 0, %s162
      %s180 = sphi 0, %s180
      %s182 = sphi 0, %s180
      %s183 = sphi 0, %s182
      %s197 = sphi 0, %s183
      %s201 = sphi 0, %s201
      %s203 = sphi 0, %s201
      %s204 = sphi 0, %s203
      %s218 = sphi 0, %s204
      %s222 = sphi 0, %s222
      %s224 = sphi 0, %s222
      %s225 = sphi 0, %s224
      %s239 = sphi 0, %s225
      %s245 = sphi 0, %s247
      %s248 = sphi 0, %s245
      %s249 = sphi 0, %s248
      %s265 = sphi 0, %s249
    $region4: #{_lambda_.1} parent=1 // loop_header_branch
      %23 = sbr.rel (%p21) target = $region8
    $region5: #{_lambda_.1} parent=1 // loop_body
      %s25 = ssub.s32 %s20, 1
      %s26 = ssub.s32 %s20, 2
      %s27 = sadd.s32 %s20, 1
      %s28 = ssub.s32 %s20, %s27
      %p29 = scmp.eq.s32.totalorder %s28, 0
      %s31 = sadd.s32 %s30, 1
      %s32 = scalar_select %p29, %s30, %s31
      %p35 = pneg %p29
      %p36 = scmp.eq.s32.totalorder %s20, 1
      %p37 = por %p35, %p36
      %p38 = scmp.ne.s32.totalorder %s30, %s33
      %p39 = scmp.eq.s32.totalorder %s20, 0
      %p40 = por %p38, %p39
      %p41 = scmp.ne.s32.totalorder %s30, %s33
      %p42 = scmp.eq.s32.totalorder %s25, 1
      %p43 = por %p41, %p42
      %p44 = scmp.ne.s32.totalorder %s33, %s34
      %p45 = scmp.eq.s32.totalorder %s25, 0
      %p46 = por %p44, %p45
      %p47 = scmp.ne.s32.totalorder %s33, %s34
      %p48 = scmp.eq.s32.totalorder %s26, 1
      %p49 = por %p47, %p48
      %p51 = scmp.ne.s32.totalorder %s34, %s50
      %p52 = scmp.eq.s32.totalorder %s26, 0
      %p53 = por %p51, %p52
      %s55 = sadd.s32 %s54, 1
      %p58 = scmp.eq.s32.totalorder %s20, 1
      %p59 = scmp.ne.s32.totalorder %s54, %s56
      %p60 = scmp.eq.s32.totalorder %s20, 0
      %p61 = por %p59, %p60
      %p62 = scmp.ne.s32.totalorder %s54, %s56
      %p63 = scmp.eq.s32.totalorder %s25, 1
      %p64 = por %p62, %p63
      %p65 = scmp.ne.s32.totalorder %s56, %s57
      %p66 = scmp.eq.s32.totalorder %s25, 0
      %p67 = por %p65, %p66
      %p68 = scmp.ne.s32.totalorder %s56, %s57
      %p69 = scmp.eq.s32.totalorder %s26, 1
      %p70 = por %p68, %p69
      %p72 = scmp.ne.s32.totalorder %s57, %s71
      %p73 = scmp.eq.s32.totalorder %s26, 0
      %p74 = por %p72, %p73
      %s76 = sadd.s32 %s75, 1
      %p79 = scmp.eq.s32.totalorder %s20, 1
      %p80 = scmp.ne.s32.totalorder %s75, %s77
      %p81 = scmp.eq.s32.totalorder %s20, 0
      %p82 = por %p80, %p81
      %p83 = scmp.ne.s32.totalorder %s75, %s77
      %p84 = scmp.eq.s32.totalorder %s25, 1
      %p85 = por %p83, %p84
      %p86 = scmp.ne.s32.totalorder %s77, %s78
      %p87 = scmp.eq.s32.totalorder %s25, 0
      %p88 = por %p86, %p87
      %p89 = scmp.ne.s32.totalorder %s77, %s78
      %p90 = scmp.eq.s32.totalorder %s26, 1
      %p91 = por %p89, %p90
      %p93 = scmp.ne.s32.totalorder %s78, %s92
      %p94 = scmp.eq.s32.totalorder %s26, 0
      %p95 = por %p93, %p94
      %s97 = sadd.s32 %s96, 1
      %p100 = scmp.eq.s32.totalorder %s20, 1
      %p101 = scmp.ne.s32.totalorder %s96, %s98
      %p102 = scmp.eq.s32.totalorder %s20, 0
      %p103 = por %p101, %p102
      %p104 = scmp.ne.s32.totalorder %s96, %s98
      %p105 = scmp.eq.s32.totalorder %s25, 1
      %p106 = por %p104, %p105
      %p107 = scmp.ne.s32.totalorder %s98, %s99
      %p108 = scmp.eq.s32.totalorder %s25, 0
      %p109 = por %p107, %p108
      %p110 = scmp.ne.s32.totalorder %s98, %s99
      %p111 = scmp.eq.s32.totalorder %s26, 1
      %p112 = por %p110, %p111
      %p114 = scmp.ne.s32.totalorder %s99, %s113
      %p115 = scmp.eq.s32.totalorder %s26, 0
      %p116 = por %p114, %p115
      %s118 = sadd.s32 %s117, 1
      %p121 = scmp.eq.s32.totalorder %s20, 1
      %p122 = scmp.ne.s32.totalorder %s117, %s119
      %p123 = scmp.eq.s32.totalorder %s20, 0
      %p124 = por %p122, %p123
      %p125 = scmp.ne.s32.totalorder %s117, %s119
      %p126 = scmp.eq.s32.totalorder %s25, 1
      %p127 = por %p125, %p126
      %p128 = scmp.ne.s32.totalorder %s119, %s120
      %p129 = scmp.eq.s32.totalorder %s25, 0
      %p130 = por %p128, %p129
      %p131 = scmp.ne.s32.totalorder %s119, %s120
      %p132 = scmp.eq.s32.totalorder %s26, 1
      %p133 = por %p131, %p132
      %p135 = scmp.ne.s32.totalorder %s120, %s134
      %p136 = scmp.eq.s32.totalorder %s26, 0
      %p137 = por %p135, %p136
      %s139 = sadd.s32 %s138, 1
      %p142 = scmp.eq.s32.totalorder %s20, 1
      %p143 = scmp.ne.s32.totalorder %s138, %s140
      %p144 = scmp.eq.s32.totalorder %s20, 0
      %p145 = por %p143, %p144
      %p146 = scmp.ne.s32.totalorder %s138, %s140
      %p147 = scmp.eq.s32.totalorder %s25, 1
      %p148 = por %p146, %p147
      %p149 = scmp.ne.s32.totalorder %s140, %s141
      %p150 = scmp.eq.s32.totalorder %s25, 0
      %p151 = por %p149, %p150
      %p152 = scmp.ne.s32.totalorder %s140, %s141
      %p153 = scmp.eq.s32.totalorder %s26, 1
      %p154 = por %p152, %p153
      %p156 = scmp.ne.s32.totalorder %s141, %s155
      %p157 = scmp.eq.s32.totalorder %s26, 0
      %p158 = por %p156, %p157
      %s160 = sadd.s32 %s159, 1
      %p163 = scmp.eq.s32.totalorder %s20, 1
      %p164 = scmp.ne.s32.totalorder %s159, %s161
      %p165 = scmp.eq.s32.totalorder %s20, 0
      %p166 = por %p164, %p165
      %p167 = scmp.ne.s32.totalorder %s159, %s161
      %p168 = scmp.eq.s32.totalorder %s25, 1
      %p169 = por %p167, %p168
      %p170 = scmp.ne.s32.totalorder %s161, %s162
      %p171 = scmp.eq.s32.totalorder %s25, 0
      %p172 = por %p170, %p171
      %p173 = scmp.ne.s32.totalorder %s161, %s162
      %p174 = scmp.eq.s32.totalorder %s26, 1
      %p175 = por %p173, %p174
      %p177 = scmp.ne.s32.totalorder %s162, %s176
      %p178 = scmp.eq.s32.totalorder %s26, 0
      %p179 = por %p177, %p178
      %s181 = sadd.s32 %s180, 1
      %p184 = scmp.eq.s32.totalorder %s20, 1
      %p185 = scmp.ne.s32.totalorder %s180, %s182
      %p186 = scmp.eq.s32.totalorder %s20, 0
      %p187 = por %p185, %p186
      %p188 = scmp.ne.s32.totalorder %s180, %s182
      %p189 = scmp.eq.s32.totalorder %s25, 1
      %p190 = por %p188, %p189
      %p191 = scmp.ne.s32.totalorder %s182, %s183
      %p192 = scmp.eq.s32.totalorder %s25, 0
      %p193 = por %p191, %p192
      %p194 = scmp.ne.s32.totalorder %s182, %s183
      %p195 = scmp.eq.s32.totalorder %s26, 1
      %p196 = por %p194, %p195
      %p198 = scmp.ne.s32.totalorder %s183, %s197
      %p199 = scmp.eq.s32.totalorder %s26, 0
      %p200 = por %p198, %p199
      %s202 = sadd.s32 %s201, 1
      %p205 = scmp.eq.s32.totalorder %s20, 1
      %p206 = scmp.ne.s32.totalorder %s201, %s203
      %p207 = scmp.eq.s32.totalorder %s20, 0
      %p208 = por %p206, %p207
      %p209 = scmp.ne.s32.totalorder %s201, %s203
      %p210 = scmp.eq.s32.totalorder %s25, 1
      %p211 = por %p209, %p210
      %p212 = scmp.ne.s32.totalorder %s203, %s204
      %p213 = scmp.eq.s32.totalorder %s25, 0
      %p214 = por %p212, %p213
      %p215 = scmp.ne.s32.totalorder %s203, %s204
      %p216 = scmp.eq.s32.totalorder %s26, 1
      %p217 = por %p215, %p216
      %p219 = scmp.ne.s32.totalorder %s204, %s218
      %p220 = scmp.eq.s32.totalorder %s26, 0
      %p221 = por %p219, %p220
      %s223 = sadd.s32 %s222, 1
      %p226 = scmp.eq.s32.totalorder %s20, 1
      %p227 = scmp.ne.s32.totalorder %s222, %s224
      %p228 = scmp.eq.s32.totalorder %s20, 0
      %p229 = por %p227, %p228
      %p230 = scmp.ne.s32.totalorder %s222, %s224
      %p231 = scmp.eq.s32.totalorder %s25, 1
      %p232 = por %p230, %p231
      %p233 = scmp.ne.s32.totalorder %s224, %s225
      %p234 = scmp.eq.s32.totalorder %s25, 0
      %p235 = por %p233, %p234
      %p236 = scmp.ne.s32.totalorder %s224, %s225
      %p237 = scmp.eq.s32.totalorder %s26, 1
      %p238 = por %p236, %p237
      %p240 = scmp.ne.s32.totalorder %s225, %s239
      %p241 = scmp.eq.s32.totalorder %s26, 0
      %p242 = por %p240, %p241
      %s243 = ssub.s32 %s20, %s27
      %p244 = scmp.eq.s32.totalorder %s243, 0
      %s246 = sadd.s32 %s245, 1
      %s247 = scalar_select %p244, %s245, %s246
      %p250 = pneg %p244
      %p251 = scmp.eq.s32.totalorder %s20, 1
      %p252 = por %p250, %p251
      %p253 = scmp.ne.s32.totalorder %s245, %s248
      %p254 = scmp.eq.s32.totalorder %s20, 0
      %p255 = por %p253, %p254
      %p256 = scmp.ne.s32.totalorder %s245, %s248
      %p257 = scmp.eq.s32.totalorder %s25, 1
      %p258 = por %p256, %p257
      %p259 = scmp.ne.s32.totalorder %s248, %s249
      %p260 = scmp.eq.s32.totalorder %s25, 0
      %p261 = por %p259, %p260
      %p262 = scmp.ne.s32.totalorder %s248, %s249
      %p263 = scmp.eq.s32.totalorder %s26, 1
      %p264 = por %p262, %p263
      %p266 = scmp.ne.s32.totalorder %s249, %s265
      %p267 = scmp.eq.s32.totalorder %s26, 0
      %p268 = por %p266, %p267
      %p269 = scmp.le.s32.totalorder 1, %s20
      %p270 = scmp.lt.s32.totalorder %s20, 3
      %p271 = pnand %p269, %p270
      %p272 = pneg %p271
      // Predicated region
      $region9: #{_lambda_.1} parent=5 // pred_check
        _
      $region10: #{_lambda_.1} parent=5 // pred_check_branch
        %274 = sbr.rel (%p271) target = $region12
      $region11: #{_lambda_.1} parent=5 // pred_region
        %s275 = ssub.s32 %s20, 1
        // Predicated region
        $region13: #{_lambda_.1} parent=11 // pred_check
          %p276 = pneg %p67
        $region14: #{_lambda_.1} parent=11 // pred_check_branch
          %278 = sbr.rel (%p276) target = $region16
        $region15: #{_lambda_.1} parent=11 // pred_region
          _
        $region16: #{_lambda_.1} parent=11 // pred_fallthru
          _
        // Predicated region
        $region17: #{_lambda_.1} parent=11 // pred_check
          %p279 = pneg %p88
        $region18: #{_lambda_.1} parent=11 // pred_check_branch
          %281 = sbr.rel (%p279) target = $region20
        $region19: #{_lambda_.1} parent=11 // pred_region
          _
        $region20: #{_lambda_.1} parent=11 // pred_fallthru
          _
        // Predicated region
        $region21: #{_lambda_.1} parent=11 // pred_check
          %p282 = pneg %p109
        $region22: #{_lambda_.1} parent=11 // pred_check_branch
          %284 = sbr.rel (%p282) target = $region24
        $region23: #{_lambda_.1} parent=11 // pred_region
          _
        $region24: #{_lambda_.1} parent=11 // pred_fallthru
          _
        // Predicated region
        $region25: #{_lambda_.1} parent=11 // pred_check
          %p285 = pneg %p130
        $region26: #{_lambda_.1} parent=11 // pred_check_branch
          %287 = sbr.rel (%p285) target = $region28
        $region27: #{_lambda_.1} parent=11 // pred_region
          _
        $region28: #{_lambda_.1} parent=11 // pred_fallthru
          _
        // Predicated region
        $region29: #{_lambda_.1} parent=11 // pred_check
          %p288 = pneg %p151
        $region30: #{_lambda_.1} parent=11 // pred_check_branch
          %290 = sbr.rel (%p288) target = $region32
        $region31: #{_lambda_.1} parent=11 // pred_region
          _
        $region32: #{_lambda_.1} parent=11 // pred_fallthru
          _
        // Predicated region
        $region33: #{_lambda_.1} parent=11 // pred_check
          %p291 = pneg %p172
        $region34: #{_lambda_.1} parent=11 // pred_check_branch
          %293 = sbr.rel (%p291) target = $region36
        $region35: #{_lambda_.1} parent=11 // pred_region
          _
        $region36: #{_lambda_.1} parent=11 // pred_fallthru
          _
        // Predicated region
        $region37: #{_lambda_.1} parent=11 // pred_check
          %p294 = pneg %p193
        $region38: #{_lambda_.1} parent=11 // pred_check_branch
          %296 = sbr.rel (%p294) target = $region40
        $region39: #{_lambda_.1} parent=11 // pred_region
          %s298 = ssub.s32 64, 64
          %299 = vsyncadd [#allocation3], %s298
          %s300 = sshll.u32 [#allocation2], 4
          %s301 = int_to_ptr.vmem [resolvable:$true] %s300
          %306 = dma.hbm_to_vmem [thread:$0]  %s7, 64, %s301, [#allocation3], 16, 16, 1
        $region40: #{_lambda_.1} parent=11 // pred_fallthru
          _
        // Predicated region
        $region41: #{_lambda_.1} parent=11 // pred_check
          %p307 = pneg %p214
        $region42: #{_lambda_.1} parent=11 // pred_check_branch
          %309 = sbr.rel (%p307) target = $region44
        $region43: #{_lambda_.1} parent=11 // pred_region
          _
        $region44: #{_lambda_.1} parent=11 // pred_fallthru
          _
        // Predicated region
        $region45: #{_lambda_.1} parent=11 // pred_check
          %p310 = pneg %p235
        $region46: #{_lambda_.1} parent=11 // pred_check_branch
          %312 = sbr.rel (%p310) target = $region48
        $region47: #{_lambda_.1} parent=11 // pred_region
          _
        $region48: #{_lambda_.1} parent=11 // pred_fallthru
          _
      $region12: #{_lambda_.1} parent=5 // pred_fallthru
        _
      %p313 = scmp.lt.s32.totalorder %s20, 2
      // Predicated region
      $region49: #{_lambda_.1} parent=5 // pred_check
        %p314 = pneg %p313
      $region50: #{_lambda_.1} parent=5 // pred_check_branch
        %316 = sbr.rel (%p314) target = $region52
      $region51: #{_lambda_.1} parent=5 // pred_region
        // Predicated region
        $region53: #{_lambda_.1} parent=51 // pred_check
          %p317 = pneg %p40
        $region54: #{_lambda_.1} parent=51 // pred_check_branch
          %319 = sbr.rel (%p317) target = $region56
        $region55: #{_lambda_.1} parent=51 // pred_region
          %p320 = scmp.lt.s32.totalorder %s20, 1
          %s321 = scalar_select %p320, %s20, 1
          %s322 = smul.addr %s321, 2
          %s323 = smul.addr %s322, 4
          %s324 = scalar_lea.vmem %s0, %s323
        $region56: #{_lambda_.1} parent=51 // pred_fallthru
          _
      $region52: #{_lambda_.1} parent=5 // pred_fallthru
        _
      %p325 = scmp.le.s32.totalorder 1, %s20
      %p326 = scmp.lt.s32.totalorder %s20, 3
      %p327 = pnand %p325, %p326
      %p328 = pneg %p327
      // Predicated region
      $region57: #{_lambda_.1} parent=5 // pred_check
        _
      $region58: #{_lambda_.1} parent=5 // pred_check_branch
        %330 = sbr.rel (%p327) target = $region60
      $region59: #{_lambda_.1} parent=5 // pred_region
        %s331 = ssub.s32 %s20, 1
        // Predicated region
        $region61: #{_lambda_.1} parent=59 // pred_check
          %p332 = pneg %p193
        $region62: #{_lambda_.1} parent=59 // pred_check_branch
          %334 = sbr.rel (%p332) target = $region64
        $region63: #{_lambda_.1} parent=59 // pred_region
          %335 = dma.done [#allocation3], 64
        $region64: #{_lambda_.1} parent=59 // pred_fallthru
          _
        %p336 = scmp.lt.s32.totalorder %s25, 1
        %s337 = scalar_select %p336, %s25, 1
        %s338 = smul.addr %s337, 2
        %s339 = smul.addr %s338, 4
        %s340 = scalar_lea.vmem %s0, %s339
        %p341 = pneg %p46
        %p342 = pneg %p43
        %p343 = pneg %p67
        %p344 = pneg %p64
        %p345 = pneg %p88
        %p346 = pneg %p85
        %p347 = pneg %p109
        %p348 = pneg %p106
        %p349 = pneg %p130
        %p350 = pneg %p127
        %p351 = pneg %p151
        %p352 = pneg %p148
        %p353 = pneg %p172
        %p354 = pneg %p169
        %p355 = pneg %p193
        %p356 = pneg %p190
        %p357 = pneg %p214
        %p358 = pneg %p211
        %p359 = pneg %p235
        %p360 = pneg %p232
        %p361 = pneg %p261
        %p362 = pneg %p258
        %s363 = sand.u32 %s248, 1
        %s364 = scalar_lea.sflag [#allocation4], %s363
        %s365 = sand.u32 %s248, 1
        %s366 = scalar_lea.vmem [#allocation5], %s365
        %p367 = scmp.lt.s32.totalorder %s25, 1
        %s368 = scalar_select %p367, %s25, 1
        %s369 = smul.addr %s368, 2
        %s370 = smul.addr %s369, 4
        %s371 = scalar_lea.vmem %s0, %s370
        %v373 = vld [vmem:[%s371] sm:$0xf]
        %v374 = vld [vmem:[%s371 + $0x4] sm:$0xf]
        %v375 = vld [vmem:[%s1] sm:$0xf]
        %v378 = vunpack.c.l.b16 %v373
        %v379 = vunpack.c.l.b16 %v374
        %v380 = vpack.c.b16 %v379, %v378
        %vm382 = vcmask 130048
        %v384 = vsel %vm382, %v375, 0
        %386 = vmatprep.subr.bf16.mxu0 0
        %387 = vmatpush1.bf16.msra.mxu0 0
        %388 = vmatprep.subr.bf16.mxu0 0
        %389 = vmatpush1.bf16.msra.mxu0 0
        %390 = vmatprep.subr.bf16.mxu0 0
        %391 = vmatpush1.bf16.msra.mxu0 0
        %392 = vmatprep.subr.bf16.mxu0 0
        %393 = vmatpush1.bf16.msra.mxu0 0
        %394 = vmatprep.subr.bf16.mxu0 0
        %395 = vmatpush1.bf16.msra.mxu0 0
        %396 = vmatprep.subr.bf16.mxu0 0
        %397 = vmatpush1.bf16.msra.mxu0 0
        %398 = vmatprep.subr.bf16.mxu0 0
        %399 = vmatpush1.bf16.msra.mxu0 0
        %400 = vmatprep.subr.bf16.mxu0 0
        %401 = vmatpush1.bf16.msra.mxu0 %v380
        %402 = vmatprep.subr.bf16.mxu0 0
        %403 = vmatpush2.bf16.msra.mxu0 0
        %404 = vmatprep.subr.bf16.mxu0 0
        %405 = vmatpush2.bf16.msra.mxu0 0
        %406 = vmatprep.subr.bf16.mxu0 0
        %407 = vmatpush2.bf16.msra.mxu0 0
        %408 = vmatprep.subr.bf16.mxu0 0
        %409 = vmatpush2.bf16.msra.mxu0 0
        %410 = vmatprep.subr.bf16.mxu0 0
        %411 = vmatpush2.bf16.msra.mxu0 0
        %412 = vmatprep.subr.bf16.mxu0 0
        %413 = vmatpush2.bf16.msra.mxu0 0
        %414 = vmatprep.subr.bf16.mxu0 0
        %415 = vmatpush2.bf16.msra.mxu0 0
        %416 = vmatprep.subr.bf16.mxu0 0
        %417 = vmatpush2.bf16.msra.mxu0 0
        %418 = vmatprep.mubr.bf16.mxu0 0
        %419 = vmatmul.mubr.bf16.gmra.mxu0 %v384
        %v420 = vpop.f32.mrf.mxu0
        %v421 = vadd.f32 0.0, %v420
        %v422 = vpop.f32.mrf.mxu0
        %v423 = vpop.f32.mrf.mxu0
        %v424 = vpop.f32.mrf.mxu0
        %425 = vdwg.mxu0
        %v426 = vpack.c.bf16 %v421, %v421
        %v427 = vld [vmem:[%s2] sm:$0xf]
        %v428 = vld [vmem:[%s2 + $0x4] sm:$0xf]
        %v429 = vld [vmem:[%s2 + $0x8] sm:$0xf]
        %v430 = vld [vmem:[%s2 + $0xc] sm:$0xf]
        %v431 = vld [vmem:[%s2 + $0x10] sm:$0xf]
        %v432 = vld [vmem:[%s2 + $0x14] sm:$0xf]
        %s433 = scalar_lea.vmem %s1, 4
        %v434 = vld [vmem:[%s433] sm:$0xf]
        %v436 = vsel %vm382, %v434, 0
        %438 = vmatprep.subr.bf16.mxu0 0
        %439 = vmatpush1.bf16.msra.mxu0 0
        %440 = vmatprep.subr.bf16.mxu0 0
        %441 = vmatpush1.bf16.msra.mxu0 0
        %442 = vmatprep.subr.bf16.mxu0 0
        %443 = vmatpush1.bf16.msra.mxu0 0
        %444 = vmatprep.subr.bf16.mxu0 0
        %445 = vmatpush1.bf16.msra.mxu0 0
        %446 = vmatprep.subr.bf16.mxu0 0
        %447 = vmatpush1.bf16.msra.mxu0 0
        %448 = vmatprep.subr.bf16.mxu0 0
        %449 = vmatpush1.bf16.msra.mxu0 0
        %450 = vmatprep.subr.bf16.mxu0 0
        %451 = vmatpush1.bf16.msra.mxu0 0
        %452 = vmatprep.subr.bf16.mxu0 0
        %453 = vmatpush1.bf16.msra.mxu0 %v380
        %454 = vmatprep.subr.bf16.mxu0 0
        %455 = vmatpush2.bf16.msra.mxu0 0
        %456 = vmatprep.subr.bf16.mxu0 0
        %457 = vmatpush2.bf16.msra.mxu0 0
        %458 = vmatprep.subr.bf16.mxu0 0
        %459 = vmatpush2.bf16.msra.mxu0 0
        %460 = vmatprep.subr.bf16.mxu0 0
        %461 = vmatpush2.bf16.msra.mxu0 0
        %462 = vmatprep.subr.bf16.mxu0 0
        %463 = vmatpush2.bf16.msra.mxu0 0
        %464 = vmatprep.subr.bf16.mxu0 0
        %465 = vmatpush2.bf16.msra.mxu0 0
        %466 = vmatprep.subr.bf16.mxu0 0
        %467 = vmatpush2.bf16.msra.mxu0 0
        %468 = vmatprep.subr.bf16.mxu0 0
        %469 = vmatpush2.bf16.msra.mxu0 0
        %470 = vmatprep.mubr.bf16.mxu0 0
        %471 = vmatmul.mubr.bf16.gmra.mxu0 %v436
        %v472 = vpop.f32.mrf.mxu0
        %v473 = vadd.f32 0.0, %v472
        %v474 = vpop.f32.mrf.mxu0
        %v475 = vpop.f32.mrf.mxu0
        %v476 = vpop.f32.mrf.mxu0
        %477 = vdwg.mxu0
        %v478 = vpack.c.bf16 %v473, %v473
        %s479 = scalar_lea.vmem %s2, 24
        %v480 = vld [vmem:[%s479] sm:$0xf]
        %v481 = vld [vmem:[%s479 + $0x4] sm:$0xf]
        %v482 = vld [vmem:[%s479 + $0x8] sm:$0xf]
        %v483 = vld [vmem:[%s479 + $0xc] sm:$0xf]
        %v484 = vld [vmem:[%s479 + $0x10] sm:$0xf]
        %v485 = vld [vmem:[%s479 + $0x14] sm:$0xf]
        %v492 = vunpack.c.l.b16 %v480
        %v493 = vunpack.c.l.b16 %v481
        %v494 = vunpack.c.l.b16 %v482
        %v495 = vunpack.c.l.b16 %v483
        %v496 = vunpack.c.l.b16 %v484
        %v497 = vunpack.c.l.b16 %v485
        %v498 = vpack.c.b16 %v493, %v492
        %v499 = vpack.c.b16 %v495, %v494
        %v500 = vpack.c.b16 %v497, %v496
        %vm504 = vcmask 392192
        %v506 = vsel %vm504, %v478, 0
        %508 = vmatprep.subr.bf16.mxu0 0
        %509 = vmatpush1.bf16.msra.mxu0 0
        %510 = vmatprep.subr.bf16.mxu0 0
        %511 = vmatpush1.bf16.msra.mxu0 0
        %512 = vmatprep.subr.bf16.mxu0 0
        %513 = vmatpush1.bf16.msra.mxu0 0
        %514 = vmatprep.subr.bf16.mxu0 0
        %515 = vmatpush1.bf16.msra.mxu0 0
        %516 = vmatprep.subr.bf16.mxu0 0
        %517 = vmatpush1.bf16.msra.mxu0 0
        %518 = vmatprep.subr.bf16.mxu0 0
        %519 = vmatpush1.bf16.msra.mxu0 %v500
        %520 = vmatprep.subr.bf16.mxu0 0
        %521 = vmatpush1.bf16.msra.mxu0 %v499
        %522 = vmatprep.subr.bf16.mxu0 0
        %523 = vmatpush1.bf16.msra.mxu0 %v498
        %524 = vmatprep.subr.bf16.mxu0 0
        %525 = vmatpush2.bf16.msra.mxu0 0
        %526 = vmatprep.subr.bf16.mxu0 0
        %527 = vmatpush2.bf16.msra.mxu0 0
        %528 = vmatprep.subr.bf16.mxu0 0
        %529 = vmatpush2.bf16.msra.mxu0 0
        %530 = vmatprep.subr.bf16.mxu0 0
        %531 = vmatpush2.bf16.msra.mxu0 0
        %532 = vmatprep.subr.bf16.mxu0 0
        %533 = vmatpush2.bf16.msra.mxu0 0
        %534 = vmatprep.subr.bf16.mxu0 0
        %535 = vmatpush2.bf16.msra.mxu0 0
        %536 = vmatprep.subr.bf16.mxu0 0
        %537 = vmatpush2.bf16.msra.mxu0 0
        %538 = vmatprep.subr.bf16.mxu0 0
        %539 = vmatpush2.bf16.msra.mxu0 0
        %540 = vmatprep.mubr.bf16.mxu0 0
        %541 = vmatmul.mubr.bf16.gmra.mxu0 %v506
        %v542 = vpop.f32.mrf.mxu0
        %v543 = vadd.f32 0.0, %v542
        %v544 = vpop.f32.mrf.mxu0
        %v545 = vpop.f32.mrf.mxu0
        %v546 = vpop.f32.mrf.mxu0
        %547 = vdwg.mxu0
        %v554 = vunpack.c.l.b16 %v427
        %v555 = vunpack.c.l.b16 %v428
        %v556 = vunpack.c.l.b16 %v429
        %v557 = vunpack.c.l.b16 %v430
        %v558 = vunpack.c.l.b16 %v431
        %v559 = vunpack.c.l.b16 %v432
        %v560 = vpack.c.b16 %v555, %v554
        %v561 = vpack.c.b16 %v557, %v556
        %v562 = vpack.c.b16 %v559, %v558
        %v567 = vsel %vm504, %v426, 0
        %569 = vmatprep.subr.bf16.mxu0 0
        %570 = vmatpush1.bf16.msra.mxu0 0
        %571 = vmatprep.subr.bf16.mxu0 0
        %572 = vmatpush1.bf16.msra.mxu0 0
        %573 = vmatprep.subr.bf16.mxu0 0
        %574 = vmatpush1.bf16.msra.mxu0 0
        %575 = vmatprep.subr.bf16.mxu0 0
        %576 = vmatpush1.bf16.msra.mxu0 0
        %577 = vmatprep.subr.bf16.mxu0 0
        %578 = vmatpush1.bf16.msra.mxu0 0
        %579 = vmatprep.subr.bf16.mxu0 0
        %580 = vmatpush1.bf16.msra.mxu0 %v562
        %581 = vmatprep.subr.bf16.mxu0 0
        %582 = vmatpush1.bf16.msra.mxu0 %v561
        %583 = vmatprep.subr.bf16.mxu0 0
        %584 = vmatpush1.bf16.msra.mxu0 %v560
        %585 = vmatprep.subr.bf16.mxu0 0
        %586 = vmatpush2.bf16.msra.mxu0 0
        %587 = vmatprep.subr.bf16.mxu0 0
        %588 = vmatpush2.bf16.msra.mxu0 0
        %589 = vmatprep.subr.bf16.mxu0 0
        %590 = vmatpush2.bf16.msra.mxu0 0
        %591 = vmatprep.subr.bf16.mxu0 0
        %592 = vmatpush2.bf16.msra.mxu0 0
        %593 = vmatprep.subr.bf16.mxu0 0
        %594 = vmatpush2.bf16.msra.mxu0 0
        %595 = vmatprep.subr.bf16.mxu0 0
        %596 = vmatpush2.bf16.msra.mxu0 0
        %597 = vmatprep.subr.bf16.mxu0 0
        %598 = vmatpush2.bf16.msra.mxu0 0
        %599 = vmatprep.subr.bf16.mxu0 0
        %600 = vmatpush2.bf16.msra.mxu0 0
        %601 = vmatprep.mubr.bf16.mxu0 0
        %602 = vmatmul.mubr.bf16.gmra.mxu0 %v567
        %v603 = vpop.f32.mrf.mxu0
        %v604 = vadd.f32 %v543, %v603
        %v605 = vpop.f32.mrf.mxu0
        %v606 = vpop.f32.mrf.mxu0
        %v607 = vpop.f32.mrf.mxu0
        %608 = vdwg.mxu0
        %s609 = scalar_lea.vmem %s1, 8
        %v610 = vld [vmem:[%s609] sm:$0xf]
        %v612 = vsel %vm382, %v610, 0
        %614 = vmatprep.subr.bf16.mxu0 0
        %615 = vmatpush1.bf16.msra.mxu0 0
        %616 = vmatprep.subr.bf16.mxu0 0
        %617 = vmatpush1.bf16.msra.mxu0 0
        %618 = vmatprep.subr.bf16.mxu0 0
        %619 = vmatpush1.bf16.msra.mxu0 0
        %620 = vmatprep.subr.bf16.mxu0 0
        %621 = vmatpush1.bf16.msra.mxu0 0
        %622 = vmatprep.subr.bf16.mxu0 0
        %623 = vmatpush1.bf16.msra.mxu0 0
        %624 = vmatprep.subr.bf16.mxu0 0
        %625 = vmatpush1.bf16.msra.mxu0 0
        %626 = vmatprep.subr.bf16.mxu0 0
        %627 = vmatpush1.bf16.msra.mxu0 0
        %628 = vmatprep.subr.bf16.mxu0 0
        %629 = vmatpush1.bf16.msra.mxu0 %v380
        %630 = vmatprep.subr.bf16.mxu0 0
        %631 = vmatpush2.bf16.msra.mxu0 0
        %632 = vmatprep.subr.bf16.mxu0 0
        %633 = vmatpush2.bf16.msra.mxu0 0
        %634 = vmatprep.subr.bf16.mxu0 0
        %635 = vmatpush2.bf16.msra.mxu0 0
        %636 = vmatprep.subr.bf16.mxu0 0
        %637 = vmatpush2.bf16.msra.mxu0 0
        %638 = vmatprep.subr.bf16.mxu0 0
        %639 = vmatpush2.bf16.msra.mxu0 0
        %640 = vmatprep.subr.bf16.mxu0 0
        %641 = vmatpush2.bf16.msra.mxu0 0
        %642 = vmatprep.subr.bf16.mxu0 0
        %643 = vmatpush2.bf16.msra.mxu0 0
        %644 = vmatprep.subr.bf16.mxu0 0
        %645 = vmatpush2.bf16.msra.mxu0 0
        %646 = vmatprep.mubr.bf16.mxu0 0
        %647 = vmatmul.mubr.bf16.gmra.mxu0 %v612
        %v648 = vpop.f32.mrf.mxu0
        %v649 = vadd.f32 0.0, %v648
        %v650 = vpop.f32.mrf.mxu0
        %v651 = vpop.f32.mrf.mxu0
        %v652 = vpop.f32.mrf.mxu0
        %653 = vdwg.mxu0
        %v654 = vpack.c.bf16 %v649, %v649
        %s655 = scalar_lea.vmem %s2, 48
        %v656 = vld [vmem:[%s655] sm:$0xf]
        %v657 = vld [vmem:[%s655 + $0x4] sm:$0xf]
        %v658 = vld [vmem:[%s655 + $0x8] sm:$0xf]
        %v659 = vld [vmem:[%s655 + $0xc] sm:$0xf]
        %v660 = vld [vmem:[%s655 + $0x10] sm:$0xf]
        %v661 = vld [vmem:[%s655 + $0x14] sm:$0xf]
        %v668 = vunpack.c.l.b16 %v656
        %v669 = vunpack.c.l.b16 %v657
        %v670 = vunpack.c.l.b16 %v658
        %v671 = vunpack.c.l.b16 %v659
        %v672 = vunpack.c.l.b16 %v660
        %v673 = vunpack.c.l.b16 %v661
        %v674 = vpack.c.b16 %v669, %v668
        %v675 = vpack.c.b16 %v671, %v670
        %v676 = vpack.c.b16 %v673, %v672
        %v681 = vsel %vm504, %v654, 0
        %683 = vmatprep.subr.bf16.mxu0 0
        %684 = vmatpush1.bf16.msra.mxu0 0
        %685 = vmatprep.subr.bf16.mxu0 0
        %686 = vmatpush1.bf16.msra.mxu0 0
        %687 = vmatprep.subr.bf16.mxu0 0
        %688 = vmatpush1.bf16.msra.mxu0 0
        %689 = vmatprep.subr.bf16.mxu0 0
        %690 = vmatpush1.bf16.msra.mxu0 0
        %691 = vmatprep.subr.bf16.mxu0 0
        %692 = vmatpush1.bf16.msra.mxu0 0
        %693 = vmatprep.subr.bf16.mxu0 0
        %694 = vmatpush1.bf16.msra.mxu0 %v676
        %695 = vmatprep.subr.bf16.mxu0 0
        %696 = vmatpush1.bf16.msra.mxu0 %v675
        %697 = vmatprep.subr.bf16.mxu0 0
        %698 = vmatpush1.bf16.msra.mxu0 %v674
        %699 = vmatprep.subr.bf16.mxu0 0
        %700 = vmatpush2.bf16.msra.mxu0 0
        %701 = vmatprep.subr.bf16.mxu0 0
        %702 = vmatpush2.bf16.msra.mxu0 0
        %703 = vmatprep.subr.bf16.mxu0 0
        %704 = vmatpush2.bf16.msra.mxu0 0
        %705 = vmatprep.subr.bf16.mxu0 0
        %706 = vmatpush2.bf16.msra.mxu0 0
        %707 = vmatprep.subr.bf16.mxu0 0
        %708 = vmatpush2.bf16.msra.mxu0 0
        %709 = vmatprep.subr.bf16.mxu0 0
        %710 = vmatpush2.bf16.msra.mxu0 0
        %711 = vmatprep.subr.bf16.mxu0 0
        %712 = vmatpush2.bf16.msra.mxu0 0
        %713 = vmatprep.subr.bf16.mxu0 0
        %714 = vmatpush2.bf16.msra.mxu0 0
        %715 = vmatprep.mubr.bf16.mxu0 0
        %716 = vmatmul.mubr.bf16.gmra.mxu0 %v681
        %v717 = vpop.f32.mrf.mxu0
        %v718 = vadd.f32 0.0, %v717
        %v719 = vpop.f32.mrf.mxu0
        %v720 = vpop.f32.mrf.mxu0
        %v721 = vpop.f32.mrf.mxu0
        %722 = vdwg.mxu0
        %v723 = vadd.f32 %v604, %v718
        %s724 = scalar_lea.vmem %s1, 12
        %v725 = vld [vmem:[%s724] sm:$0xf]
        %v727 = vsel %vm382, %v725, 0
        %729 = vmatprep.subr.bf16.mxu0 0
        %730 = vmatpush1.bf16.msra.mxu0 0
        %731 = vmatprep.subr.bf16.mxu0 0
        %732 = vmatpush1.bf16.msra.mxu0 0
        %733 = vmatprep.subr.bf16.mxu0 0
        %734 = vmatpush1.bf16.msra.mxu0 0
        %735 = vmatprep.subr.bf16.mxu0 0
        %736 = vmatpush1.bf16.msra.mxu0 0
        %737 = vmatprep.subr.bf16.mxu0 0
        %738 = vmatpush1.bf16.msra.mxu0 0
        %739 = vmatprep.subr.bf16.mxu0 0
        %740 = vmatpush1.bf16.msra.mxu0 0
        %741 = vmatprep.subr.bf16.mxu0 0
        %742 = vmatpush1.bf16.msra.mxu0 0
        %743 = vmatprep.subr.bf16.mxu0 0
        %744 = vmatpush1.bf16.msra.mxu0 %v380
        %745 = vmatprep.subr.bf16.mxu0 0
        %746 = vmatpush2.bf16.msra.mxu0 0
        %747 = vmatprep.subr.bf16.mxu0 0
        %748 = vmatpush2.bf16.msra.mxu0 0
        %749 = vmatprep.subr.bf16.mxu0 0
        %750 = vmatpush2.bf16.msra.mxu0 0
        %751 = vmatprep.subr.bf16.mxu0 0
        %752 = vmatpush2.bf16.msra.mxu0 0
        %753 = vmatprep.subr.bf16.mxu0 0
        %754 = vmatpush2.bf16.msra.mxu0 0
        %755 = vmatprep.subr.bf16.mxu0 0
        %756 = vmatpush2.bf16.msra.mxu0 0
        %757 = vmatprep.subr.bf16.mxu0 0
        %758 = vmatpush2.bf16.msra.mxu0 0
        %759 = vmatprep.subr.bf16.mxu0 0
        %760 = vmatpush2.bf16.msra.mxu0 0
        %761 = vmatprep.mubr.bf16.mxu0 0
        %762 = vmatmul.mubr.bf16.gmra.mxu0 %v727
        %v763 = vpop.f32.mrf.mxu0
        %v764 = vadd.f32 0.0, %v763
        %v765 = vpop.f32.mrf.mxu0
        %v766 = vpop.f32.mrf.mxu0
        %v767 = vpop.f32.mrf.mxu0
        %768 = vdwg.mxu0
        %v769 = vpack.c.bf16 %v764, %v764
        %s770 = scalar_lea.vmem %s2, 72
        %v771 = vld [vmem:[%s770] sm:$0xf]
        %v772 = vld [vmem:[%s770 + $0x4] sm:$0xf]
        %v773 = vld [vmem:[%s770 + $0x8] sm:$0xf]
        %v774 = vld [vmem:[%s770 + $0xc] sm:$0xf]
        %v775 = vld [vmem:[%s770 + $0x10] sm:$0xf]
        %v776 = vld [vmem:[%s770 + $0x14] sm:$0xf]
        %v783 = vunpack.c.l.b16 %v771
        %v784 = vunpack.c.l.b16 %v772
        %v785 = vunpack.c.l.b16 %v773
        %v786 = vunpack.c.l.b16 %v774
        %v787 = vunpack.c.l.b16 %v775
        %v788 = vunpack.c.l.b16 %v776
        %v789 = vpack.c.b16 %v784, %v783
        %v790 = vpack.c.b16 %v786, %v785
        %v791 = vpack.c.b16 %v788, %v787
        %v796 = vsel %vm504, %v769, 0
        %798 = vmatprep.subr.bf16.mxu0 0
        %799 = vmatpush1.bf16.msra.mxu0 0
        %800 = vmatprep.subr.bf16.mxu0 0
        %801 = vmatpush1.bf16.msra.mxu0 0
        %802 = vmatprep.subr.bf16.mxu0 0
        %803 = vmatpush1.bf16.msra.mxu0 0
        %804 = vmatprep.subr.bf16.mxu0 0
        %805 = vmatpush1.bf16.msra.mxu0 0
        %806 = vmatprep.subr.bf16.mxu0 0
        %807 = vmatpush1.bf16.msra.mxu0 0
        %808 = vmatprep.subr.bf16.mxu0 0
        %809 = vmatpush1.bf16.msra.mxu0 %v791
        %810 = vmatprep.subr.bf16.mxu0 0
        %811 = vmatpush1.bf16.msra.mxu0 %v790
        %812 = vmatprep.subr.bf16.mxu0 0
        %813 = vmatpush1.bf16.msra.mxu0 %v789
        %814 = vmatprep.subr.bf16.mxu0 0
        %815 = vmatpush2.bf16.msra.mxu0 0
        %816 = vmatprep.subr.bf16.mxu0 0
        %817 = vmatpush2.bf16.msra.mxu0 0
        %818 = vmatprep.subr.bf16.mxu0 0
        %819 = vmatpush2.bf16.msra.mxu0 0
        %820 = vmatprep.subr.bf16.mxu0 0
        %821 = vmatpush2.bf16.msra.mxu0 0
        %822 = vmatprep.subr.bf16.mxu0 0
        %823 = vmatpush2.bf16.msra.mxu0 0
        %824 = vmatprep.subr.bf16.mxu0 0
        %825 = vmatpush2.bf16.msra.mxu0 0
        %826 = vmatprep.subr.bf16.mxu0 0
        %827 = vmatpush2.bf16.msra.mxu0 0
        %828 = vmatprep.subr.bf16.mxu0 0
        %829 = vmatpush2.bf16.msra.mxu0 0
        %830 = vmatprep.mubr.bf16.mxu0 0
        %831 = vmatmul.mubr.bf16.gmra.mxu0 %v796
        %v832 = vpop.f32.mrf.mxu0
        %v833 = vadd.f32 0.0, %v832
        %v834 = vpop.f32.mrf.mxu0
        %v835 = vpop.f32.mrf.mxu0
        %v836 = vpop.f32.mrf.mxu0
        %837 = vdwg.mxu0
        %v838 = vadd.f32 %v723, %v833
        %v839 = vld [vmem:[%s3] sm:$0x1]
        %v841 = vlaneseq
        %v842 = vshrl.u32 %v841, 7
        %v843 = vsub.s32 0, %v842
        %v844 = vrot.slane %v839, %v843
        %v846 = vadd.f32 %v838, %v844
        %vm847 = vcmp.gt.f32.partialorder %v846, 0.0
        %v848 = vmul.f32 %v846, 0.01
        %v849 = vsel %vm847, %v846, %v848
        %v850 = vpack.c.bf16 %v849, %v849
        %v851 = vld [vmem:[%s4] sm:$0x3]
        %vm852 = vcmask 64512
        %v854 = vsel %vm852, %v851, 0
        %vm856 = vcmask 1043456
        %v858 = vsel %vm856, %v850, 0
        %860 = vmatprep.subr.bf16.mxu0 0
        %861 = vmatpush1.bf16.msra.mxu0 0
        %862 = vmatprep.subr.bf16.mxu0 0
        %863 = vmatpush1.bf16.msra.mxu0 0
        %864 = vmatprep.subr.bf16.mxu0 0
        %865 = vmatpush1.bf16.msra.mxu0 0
        %866 = vmatprep.subr.bf16.mxu0 0
        %867 = vmatpush1.bf16.msra.mxu0 0
        %868 = vmatprep.subr.bf16.mxu0 0
        %869 = vmatpush1.bf16.msra.mxu0 0
        %870 = vmatprep.subr.bf16.mxu0 0
        %871 = vmatpush1.bf16.msra.mxu0 0
        %872 = vmatprep.subr.bf16.mxu0 0
        %873 = vmatpush1.bf16.msra.mxu0 0
        %874 = vmatprep.subr.bf16.mxu0 0
        %875 = vmatpush1.bf16.msra.mxu0 %v858
        %876 = vmatprep.subr.bf16.mxu0 0
        %877 = vmatpush2.bf16.msra.mxu0 0
        %878 = vmatprep.subr.bf16.mxu0 0
        %879 = vmatpush2.bf16.msra.mxu0 0
        %880 = vmatprep.subr.bf16.mxu0 0
        %881 = vmatpush2.bf16.msra.mxu0 0
        %882 = vmatprep.subr.bf16.mxu0 0
        %883 = vmatpush2.bf16.msra.mxu0 0
        %884 = vmatprep.subr.bf16.mxu0 0
        %885 = vmatpush2.bf16.msra.mxu0 0
        %886 = vmatprep.subr.bf16.mxu0 0
        %887 = vmatpush2.bf16.msra.mxu0 0
        %888 = vmatprep.subr.bf16.mxu0 0
        %889 = vmatpush2.bf16.msra.mxu0 0
        %890 = vmatprep.subr.bf16.mxu0 0
        %891 = vmatpush2.bf16.msra.mxu0 0
        %892 = vmatprep.mubr.bf16.mxu0 0
        %893 = vmatmul.mubr.bf16.gmra.mxu0 %v854
        %v894 = vpop.f32.mrf.mxu0
        %v895 = vadd.f32 0.0, %v894
        %v896 = vpop.f32.mrf.mxu0
        %v897 = vpop.f32.mrf.mxu0
        %v898 = vpop.f32.mrf.mxu0
        %899 = vdwg.mxu0
        %v900 = vpack.c.bf16 %v895, %v895
        %v901 = vld [vmem:[%s5] sm:$0xf]
        %v902 = vld [vmem:[%s5 + $0x4] sm:$0xf]
        %v903 = vld [vmem:[%s5 + $0x8] sm:$0xf]
        %v904 = vld [vmem:[%s5 + $0xc] sm:$0xf]
        %v905 = vld [vmem:[%s5 + $0x10] sm:$0xf]
        %v906 = vld [vmem:[%s5 + $0x14] sm:$0xf]
        %v907 = vld [vmem:[%s5 + $0x18] sm:$0xf]
        %v908 = vld [vmem:[%s5 + $0x1c] sm:$0xf]
        %s909 = scalar_lea.vmem %s4, 2
        %v910 = vld [vmem:[%s909] sm:$0x3]
        %v912 = vsel %vm852, %v910, 0
        %914 = vmatprep.subr.bf16.mxu0 0
        %915 = vmatpush1.bf16.msra.mxu0 0
        %916 = vmatprep.subr.bf16.mxu0 0
        %917 = vmatpush1.bf16.msra.mxu0 0
        %918 = vmatprep.subr.bf16.mxu0 0
        %919 = vmatpush1.bf16.msra.mxu0 0
        %920 = vmatprep.subr.bf16.mxu0 0
        %921 = vmatpush1.bf16.msra.mxu0 0
        %922 = vmatprep.subr.bf16.mxu0 0
        %923 = vmatpush1.bf16.msra.mxu0 0
        %924 = vmatprep.subr.bf16.mxu0 0
        %925 = vmatpush1.bf16.msra.mxu0 0
        %926 = vmatprep.subr.bf16.mxu0 0
        %927 = vmatpush1.bf16.msra.mxu0 0
        %928 = vmatprep.subr.bf16.mxu0 0
        %929 = vmatpush1.bf16.msra.mxu0 %v858
        %930 = vmatprep.subr.bf16.mxu0 0
        %931 = vmatpush2.bf16.msra.mxu0 0
        %932 = vmatprep.subr.bf16.mxu0 0
        %933 = vmatpush2.bf16.msra.mxu0 0
        %934 = vmatprep.subr.bf16.mxu0 0
        %935 = vmatpush2.bf16.msra.mxu0 0
        %936 = vmatprep.subr.bf16.mxu0 0
        %937 = vmatpush2.bf16.msra.mxu0 0
        %938 = vmatprep.subr.bf16.mxu0 0
        %939 = vmatpush2.bf16.msra.mxu0 0
        %940 = vmatprep.subr.bf16.mxu0 0
        %941 = vmatpush2.bf16.msra.mxu0 0
        %942 = vmatprep.subr.bf16.mxu0 0
        %943 = vmatpush2.bf16.msra.mxu0 0
        %944 = vmatprep.subr.bf16.mxu0 0
        %945 = vmatpush2.bf16.msra.mxu0 0
        %946 = vmatprep.mubr.bf16.mxu0 0
        %947 = vmatmul.mubr.bf16.gmra.mxu0 %v912
        %v948 = vpop.f32.mrf.mxu0
        %v949 = vadd.f32 0.0, %v948
        %v950 = vpop.f32.mrf.mxu0
        %v951 = vpop.f32.mrf.mxu0
        %v952 = vpop.f32.mrf.mxu0
        %953 = vdwg.mxu0
        %v954 = vpack.c.bf16 %v949, %v949
        %s955 = scalar_lea.vmem %s5, 32
        %v956 = vld [vmem:[%s955] sm:$0xf]
        %v957 = vld [vmem:[%s955 + $0x4] sm:$0xf]
        %v958 = vld [vmem:[%s955 + $0x8] sm:$0xf]
        %v959 = vld [vmem:[%s955 + $0xc] sm:$0xf]
        %v960 = vld [vmem:[%s955 + $0x10] sm:$0xf]
        %v961 = vld [vmem:[%s955 + $0x14] sm:$0xf]
        %v962 = vld [vmem:[%s955 + $0x18] sm:$0xf]
        %v963 = vld [vmem:[%s955 + $0x1c] sm:$0xf]
        %v972 = vunpack.c.l.b16 %v956
        %v973 = vunpack.c.l.b16 %v957
        %v974 = vunpack.c.l.b16 %v958
        %v975 = vunpack.c.l.b16 %v959
        %v976 = vunpack.c.l.b16 %v960
        %v977 = vunpack.c.l.b16 %v961
        %v978 = vunpack.c.l.b16 %v962
        %v979 = vunpack.c.l.b16 %v963
        %v980 = vpack.c.b16 %v973, %v972
        %v981 = vpack.c.b16 %v975, %v974
        %v982 = vpack.c.b16 %v977, %v976
        %v983 = vpack.c.b16 %v979, %v978
        %vm988 = vcmask 523264
        %v990 = vsel %vm988, %v954, 0
        %992 = vmatprep.subr.bf16.mxu0 0
        %993 = vmatpush1.bf16.msra.mxu0 0
        %994 = vmatprep.subr.bf16.mxu0 0
        %995 = vmatpush1.bf16.msra.mxu0 0
        %996 = vmatprep.subr.bf16.mxu0 0
        %997 = vmatpush1.bf16.msra.mxu0 0
        %998 = vmatprep.subr.bf16.mxu0 0
        %999 = vmatpush1.bf16.msra.mxu0 0
        %1000 = vmatprep.subr.bf16.mxu0 0
        %1001 = vmatpush1.bf16.msra.mxu0 %v983
        %1002 = vmatprep.subr.bf16.mxu0 0
        %1003 = vmatpush1.bf16.msra.mxu0 %v982
        %1004 = vmatprep.subr.bf16.mxu0 0
        %1005 = vmatpush1.bf16.msra.mxu0 %v981
        %1006 = vmatprep.subr.bf16.mxu0 0
        %1007 = vmatpush1.bf16.msra.mxu0 %v980
        %1008 = vmatprep.subr.bf16.mxu0 0
        %1009 = vmatpush2.bf16.msra.mxu0 0
        %1010 = vmatprep.subr.bf16.mxu0 0
        %1011 = vmatpush2.bf16.msra.mxu0 0
        %1012 = vmatprep.subr.bf16.mxu0 0
        %1013 = vmatpush2.bf16.msra.mxu0 0
        %1014 = vmatprep.subr.bf16.mxu0 0
        %1015 = vmatpush2.bf16.msra.mxu0 0
        %1016 = vmatprep.subr.bf16.mxu0 0
        %1017 = vmatpush2.bf16.msra.mxu0 0
        %1018 = vmatprep.subr.bf16.mxu0 0
        %1019 = vmatpush2.bf16.msra.mxu0 0
        %1020 = vmatprep.subr.bf16.mxu0 0
        %1021 = vmatpush2.bf16.msra.mxu0 0
        %1022 = vmatprep.subr.bf16.mxu0 0
        %1023 = vmatpush2.bf16.msra.mxu0 0
        %1024 = vmatprep.mubr.bf16.mxu0 0
        %1025 = vmatmul.mubr.bf16.gmra.mxu0 %v990
        %v1026 = vpop.f32.mrf.mxu0
        %v1027 = vadd.f32 0.0, %v1026
        %v1028 = vpop.f32.mrf.mxu0
        %v1029 = vpop.f32.mrf.mxu0
        %v1030 = vpop.f32.mrf.mxu0
        %1031 = vdwg.mxu0
        %v1040 = vunpack.c.l.b16 %v901
        %v1041 = vunpack.c.l.b16 %v902
        %v1042 = vunpack.c.l.b16 %v903
        %v1043 = vunpack.c.l.b16 %v904
        %v1044 = vunpack.c.l.b16 %v905
        %v1045 = vunpack.c.l.b16 %v906
        %v1046 = vunpack.c.l.b16 %v907
        %v1047 = vunpack.c.l.b16 %v908
        %v1048 = vpack.c.b16 %v1041, %v1040
        %v1049 = vpack.c.b16 %v1043, %v1042
        %v1050 = vpack.c.b16 %v1045, %v1044
        %v1051 = vpack.c.b16 %v1047, %v1046
        %v1057 = vsel %vm988, %v900, 0
        %1059 = vmatprep.subr.bf16.mxu0 0
        %1060 = vmatpush1.bf16.msra.mxu0 0
        %1061 = vmatprep.subr.bf16.mxu0 0
        %1062 = vmatpush1.bf16.msra.mxu0 0
        %1063 = vmatprep.subr.bf16.mxu0 0
        %1064 = vmatpush1.bf16.msra.mxu0 0
        %1065 = vmatprep.subr.bf16.mxu0 0
        %1066 = vmatpush1.bf16.msra.mxu0 0
        %1067 = vmatprep.subr.bf16.mxu0 0
        %1068 = vmatpush1.bf16.msra.mxu0 %v1051
        %1069 = vmatprep.subr.bf16.mxu0 0
        %1070 = vmatpush1.bf16.msra.mxu0 %v1050
        %1071 = vmatprep.subr.bf16.mxu0 0
        %1072 = vmatpush1.bf16.msra.mxu0 %v1049
        %1073 = vmatprep.subr.bf16.mxu0 0
        %1074 = vmatpush1.bf16.msra.mxu0 %v1048
        %1075 = vmatprep.subr.bf16.mxu0 0
        %1076 = vmatpush2.bf16.msra.mxu0 0
        %1077 = vmatprep.subr.bf16.mxu0 0
        %1078 = vmatpush2.bf16.msra.mxu0 0
        %1079 = vmatprep.subr.bf16.mxu0 0
        %1080 = vmatpush2.bf16.msra.mxu0 0
        %1081 = vmatprep.subr.bf16.mxu0 0
        %1082 = vmatpush2.bf16.msra.mxu0 0
        %1083 = vmatprep.subr.bf16.mxu0 0
        %1084 = vmatpush2.bf16.msra.mxu0 0
        %1085 = vmatprep.subr.bf16.mxu0 0
        %1086 = vmatpush2.bf16.msra.mxu0 0
        %1087 = vmatprep.subr.bf16.mxu0 0
        %1088 = vmatpush2.bf16.msra.mxu0 0
        %1089 = vmatprep.subr.bf16.mxu0 0
        %1090 = vmatpush2.bf16.msra.mxu0 0
        %1091 = vmatprep.mubr.bf16.mxu0 0
        %1092 = vmatmul.mubr.bf16.gmra.mxu0 %v1057
        %v1093 = vpop.f32.mrf.mxu0
        %v1094 = vadd.f32 %v1027, %v1093
        %v1095 = vpop.f32.mrf.mxu0
        %v1096 = vpop.f32.mrf.mxu0
        %v1097 = vpop.f32.mrf.mxu0
        %1098 = vdwg.mxu0
        %s1099 = scalar_lea.vmem %s4, 4
        %v1100 = vld [vmem:[%s1099] sm:$0x3]
        %v1102 = vsel %vm852, %v1100, 0
        %1104 = vmatprep.subr.bf16.mxu0 0
        %1105 = vmatpush1.bf16.msra.mxu0 0
        %1106 = vmatprep.subr.bf16.mxu0 0
        %1107 = vmatpush1.bf16.msra.mxu0 0
        %1108 = vmatprep.subr.bf16.mxu0 0
        %1109 = vmatpush1.bf16.msra.mxu0 0
        %1110 = vmatprep.subr.bf16.mxu0 0
        %1111 = vmatpush1.bf16.msra.mxu0 0
        %1112 = vmatprep.subr.bf16.mxu0 0
        %1113 = vmatpush1.bf16.msra.mxu0 0
        %1114 = vmatprep.subr.bf16.mxu0 0
        %1115 = vmatpush1.bf16.msra.mxu0 0
        %1116 = vmatprep.subr.bf16.mxu0 0
        %1117 = vmatpush1.bf16.msra.mxu0 0
        %1118 = vmatprep.subr.bf16.mxu0 0
        %1119 = vmatpush1.bf16.msra.mxu0 %v858
        %1120 = vmatprep.subr.bf16.mxu0 0
        %1121 = vmatpush2.bf16.msra.mxu0 0
        %1122 = vmatprep.subr.bf16.mxu0 0
        %1123 = vmatpush2.bf16.msra.mxu0 0
        %1124 = vmatprep.subr.bf16.mxu0 0
        %1125 = vmatpush2.bf16.msra.mxu0 0
        %1126 = vmatprep.subr.bf16.mxu0 0
        %1127 = vmatpush2.bf16.msra.mxu0 0
        %1128 = vmatprep.subr.bf16.mxu0 0
        %1129 = vmatpush2.bf16.msra.mxu0 0
        %1130 = vmatprep.subr.bf16.mxu0 0
        %1131 = vmatpush2.bf16.msra.mxu0 0
        %1132 = vmatprep.subr.bf16.mxu0 0
        %1133 = vmatpush2.bf16.msra.mxu0 0
        %1134 = vmatprep.subr.bf16.mxu0 0
        %1135 = vmatpush2.bf16.msra.mxu0 0
        %1136 = vmatprep.mubr.bf16.mxu0 0
        %1137 = vmatmul.mubr.bf16.gmra.mxu0 %v1102
        %v1138 = vpop.f32.mrf.mxu0
        %v1139 = vadd.f32 0.0, %v1138
        %v1140 = vpop.f32.mrf.mxu0
        %v1141 = vpop.f32.mrf.mxu0
        %v1142 = vpop.f32.mrf.mxu0
        %1143 = vdwg.mxu0
        %v1144 = vpack.c.bf16 %v1139, %v1139
        %s1145 = scalar_lea.vmem %s5, 64
        %v1146 = vld [vmem:[%s1145] sm:$0xf]
        %v1147 = vld [vmem:[%s1145 + $0x4] sm:$0xf]
        %v1148 = vld [vmem:[%s1145 + $0x8] sm:$0xf]
        %v1149 = vld [vmem:[%s1145 + $0xc] sm:$0xf]
        %v1150 = vld [vmem:[%s1145 + $0x10] sm:$0xf]
        %v1151 = vld [vmem:[%s1145 + $0x14] sm:$0xf]
        %v1152 = vld [vmem:[%s1145 + $0x18] sm:$0xf]
        %v1153 = vld [vmem:[%s1145 + $0x1c] sm:$0xf]
        %v1162 = vunpack.c.l.b16 %v1146
        %v1163 = vunpack.c.l.b16 %v1147
        %v1164 = vunpack.c.l.b16 %v1148
        %v1165 = vunpack.c.l.b16 %v1149
        %v1166 = vunpack.c.l.b16 %v1150
        %v1167 = vunpack.c.l.b16 %v1151
        %v1168 = vunpack.c.l.b16 %v1152
        %v1169 = vunpack.c.l.b16 %v1153
        %v1170 = vpack.c.b16 %v1163, %v1162
        %v1171 = vpack.c.b16 %v1165, %v1164
        %v1172 = vpack.c.b16 %v1167, %v1166
        %v1173 = vpack.c.b16 %v1169, %v1168
        %v1179 = vsel %vm988, %v1144, 0
        %1181 = vmatprep.subr.bf16.mxu0 0
        %1182 = vmatpush1.bf16.msra.mxu0 0
        %1183 = vmatprep.subr.bf16.mxu0 0
        %1184 = vmatpush1.bf16.msra.mxu0 0
        %1185 = vmatprep.subr.bf16.mxu0 0
        %1186 = vmatpush1.bf16.msra.mxu0 0
        %1187 = vmatprep.subr.bf16.mxu0 0
        %1188 = vmatpush1.bf16.msra.mxu0 0
        %1189 = vmatprep.subr.bf16.mxu0 0
        %1190 = vmatpush1.bf16.msra.mxu0 %v1173
        %1191 = vmatprep.subr.bf16.mxu0 0
        %1192 = vmatpush1.bf16.msra.mxu0 %v1172
        %1193 = vmatprep.subr.bf16.mxu0 0
        %1194 = vmatpush1.bf16.msra.mxu0 %v1171
        %1195 = vmatprep.subr.bf16.mxu0 0
        %1196 = vmatpush1.bf16.msra.mxu0 %v1170
        %1197 = vmatprep.subr.bf16.mxu0 0
        %1198 = vmatpush2.bf16.msra.mxu0 0
        %1199 = vmatprep.subr.bf16.mxu0 0
        %1200 = vmatpush2.bf16.msra.mxu0 0
        %1201 = vmatprep.subr.bf16.mxu0 0
        %1202 = vmatpush2.bf16.msra.mxu0 0
        %1203 = vmatprep.subr.bf16.mxu0 0
        %1204 = vmatpush2.bf16.msra.mxu0 0
        %1205 = vmatprep.subr.bf16.mxu0 0
        %1206 = vmatpush2.bf16.msra.mxu0 0
        %1207 = vmatprep.subr.bf16.mxu0 0
        %1208 = vmatpush2.bf16.msra.mxu0 0
        %1209 = vmatprep.subr.bf16.mxu0 0
        %1210 = vmatpush2.bf16.msra.mxu0 0
        %1211 = vmatprep.subr.bf16.mxu0 0
        %1212 = vmatpush2.bf16.msra.mxu0 0
        %1213 = vmatprep.mubr.bf16.mxu0 0
        %1214 = vmatmul.mubr.bf16.gmra.mxu0 %v1179
        %v1215 = vpop.f32.mrf.mxu0
        %v1216 = vadd.f32 0.0, %v1215
        %v1217 = vpop.f32.mrf.mxu0
        %v1218 = vpop.f32.mrf.mxu0
        %v1219 = vpop.f32.mrf.mxu0
        %1220 = vdwg.mxu0
        %v1221 = vadd.f32 %v1094, %v1216
        %s1222 = scalar_lea.vmem %s4, 6
        %v1223 = vld [vmem:[%s1222] sm:$0x3]
        %v1225 = vsel %vm852, %v1223, 0
        %1227 = vmatprep.subr.bf16.mxu0 0
        %1228 = vmatpush1.bf16.msra.mxu0 0
        %1229 = vmatprep.subr.bf16.mxu0 0
        %1230 = vmatpush1.bf16.msra.mxu0 0
        %1231 = vmatprep.subr.bf16.mxu0 0
        %1232 = vmatpush1.bf16.msra.mxu0 0
        %1233 = vmatprep.subr.bf16.mxu0 0
        %1234 = vmatpush1.bf16.msra.mxu0 0
        %1235 = vmatprep.subr.bf16.mxu0 0
        %1236 = vmatpush1.bf16.msra.mxu0 0
        %1237 = vmatprep.subr.bf16.mxu0 0
        %1238 = vmatpush1.bf16.msra.mxu0 0
        %1239 = vmatprep.subr.bf16.mxu0 0
        %1240 = vmatpush1.bf16.msra.mxu0 0
        %1241 = vmatprep.subr.bf16.mxu0 0
        %1242 = vmatpush1.bf16.msra.mxu0 %v858
        %1243 = vmatprep.subr.bf16.mxu0 0
        %1244 = vmatpush2.bf16.msra.mxu0 0
        %1245 = vmatprep.subr.bf16.mxu0 0
        %1246 = vmatpush2.bf16.msra.mxu0 0
        %1247 = vmatprep.subr.bf16.mxu0 0
        %1248 = vmatpush2.bf16.msra.mxu0 0
        %1249 = vmatprep.subr.bf16.mxu0 0
        %1250 = vmatpush2.bf16.msra.mxu0 0
        %1251 = vmatprep.subr.bf16.mxu0 0
        %1252 = vmatpush2.bf16.msra.mxu0 0
        %1253 = vmatprep.subr.bf16.mxu0 0
        %1254 = vmatpush2.bf16.msra.mxu0 0
        %1255 = vmatprep.subr.bf16.mxu0 0
        %1256 = vmatpush2.bf16.msra.mxu0 0
        %1257 = vmatprep.subr.bf16.mxu0 0
        %1258 = vmatpush2.bf16.msra.mxu0 0
        %1259 = vmatprep.mubr.bf16.mxu0 0
        %1260 = vmatmul.mubr.bf16.gmra.mxu0 %v1225
        %v1261 = vpop.f32.mrf.mxu0
        %v1262 = vadd.f32 0.0, %v1261
        %v1263 = vpop.f32.mrf.mxu0
        %v1264 = vpop.f32.mrf.mxu0
        %v1265 = vpop.f32.mrf.mxu0
        %1266 = vdwg.mxu0
        %v1267 = vpack.c.bf16 %v1262, %v1262
        %s1268 = scalar_lea.vmem %s5, 96
        %v1269 = vld [vmem:[%s1268] sm:$0xf]
        %v1270 = vld [vmem:[%s1268 + $0x4] sm:$0xf]
        %v1271 = vld [vmem:[%s1268 + $0x8] sm:$0xf]
        %v1272 = vld [vmem:[%s1268 + $0xc] sm:$0xf]
        %v1273 = vld [vmem:[%s1268 + $0x10] sm:$0xf]
        %v1274 = vld [vmem:[%s1268 + $0x14] sm:$0xf]
        %v1275 = vld [vmem:[%s1268 + $0x18] sm:$0xf]
        %v1276 = vld [vmem:[%s1268 + $0x1c] sm:$0xf]
        %v1285 = vunpack.c.l.b16 %v1269
        %v1286 = vunpack.c.l.b16 %v1270
        %v1287 = vunpack.c.l.b16 %v1271
        %v1288 = vunpack.c.l.b16 %v1272
        %v1289 = vunpack.c.l.b16 %v1273
        %v1290 = vunpack.c.l.b16 %v1274
        %v1291 = vunpack.c.l.b16 %v1275
        %v1292 = vunpack.c.l.b16 %v1276
        %v1293 = vpack.c.b16 %v1286, %v1285
        %v1294 = vpack.c.b16 %v1288, %v1287
        %v1295 = vpack.c.b16 %v1290, %v1289
        %v1296 = vpack.c.b16 %v1292, %v1291
        %v1302 = vsel %vm988, %v1267, 0
        %1304 = vmatprep.subr.bf16.mxu0 0
        %1305 = vmatpush1.bf16.msra.mxu0 0
        %1306 = vmatprep.subr.bf16.mxu0 0
        %1307 = vmatpush1.bf16.msra.mxu0 0
        %1308 = vmatprep.subr.bf16.mxu0 0
        %1309 = vmatpush1.bf16.msra.mxu0 0
        %1310 = vmatprep.subr.bf16.mxu0 0
        %1311 = vmatpush1.bf16.msra.mxu0 0
        %1312 = vmatprep.subr.bf16.mxu0 0
        %1313 = vmatpush1.bf16.msra.mxu0 %v1296
        %1314 = vmatprep.subr.bf16.mxu0 0
        %1315 = vmatpush1.bf16.msra.mxu0 %v1295
        %1316 = vmatprep.subr.bf16.mxu0 0
        %1317 = vmatpush1.bf16.msra.mxu0 %v1294
        %1318 = vmatprep.subr.bf16.mxu0 0
        %1319 = vmatpush1.bf16.msra.mxu0 %v1293
        %1320 = vmatprep.subr.bf16.mxu0 0
        %1321 = vmatpush2.bf16.msra.mxu0 0
        %1322 = vmatprep.subr.bf16.mxu0 0
        %1323 = vmatpush2.bf16.msra.mxu0 0
        %1324 = vmatprep.subr.bf16.mxu0 0
        %1325 = vmatpush2.bf16.msra.mxu0 0
        %1326 = vmatprep.subr.bf16.mxu0 0
        %1327 = vmatpush2.bf16.msra.mxu0 0
        %1328 = vmatprep.subr.bf16.mxu0 0
        %1329 = vmatpush2.bf16.msra.mxu0 0
        %1330 = vmatprep.subr.bf16.mxu0 0
        %1331 = vmatpush2.bf16.msra.mxu0 0
        %1332 = vmatprep.subr.bf16.mxu0 0
        %1333 = vmatpush2.bf16.msra.mxu0 0
        %1334 = vmatprep.subr.bf16.mxu0 0
        %1335 = vmatpush2.bf16.msra.mxu0 0
        %1336 = vmatprep.mubr.bf16.mxu0 0
        %1337 = vmatmul.mubr.bf16.gmra.mxu0 %v1302
        %v1338 = vpop.f32.mrf.mxu0
        %v1339 = vadd.f32 0.0, %v1338
        %v1340 = vpop.f32.mrf.mxu0
        %v1341 = vpop.f32.mrf.mxu0
        %v1342 = vpop.f32.mrf.mxu0
        %1343 = vdwg.mxu0
        %v1344 = vadd.f32 %v1221, %v1339
        %v1345 = vld [vmem:[%s6] sm:$0x1]
        %v1347 = vlaneseq
        %v1348 = vshrl.u32 %v1347, 7
        %v1349 = vsub.s32 0, %v1348
        %v1350 = vrot.slane %v1345, %v1349
        %v1352 = vadd.f32 %v1344, %v1350
        %vm1353 = vcmp.gt.f32.partialorder %v1352, 0.0
        %v1354 = vmul.f32 %v1352, 0.01
        %v1355 = vsel %vm1353, %v1352, %v1354
        %v1356 = vpack.c.bf16 %v1355, %v1355
        %v1357 = vld [vmem:[#allocation2] sm:$0x1]
        %vm1358 = vcmask 31744
        %v1360 = vsel %vm1358, %v1357, 0
        %vm1362 = vcmask 1041408
        %v1364 = vsel %vm1362, %v1356, 0
        %1366 = vmatprep.subr.bf16.mxu0 0
        %1367 = vmatpush1.bf16.msra.mxu0 0
        %1368 = vmatprep.subr.bf16.mxu0 0
        %1369 = vmatpush1.bf16.msra.mxu0 0
        %1370 = vmatprep.subr.bf16.mxu0 0
        %1371 = vmatpush1.bf16.msra.mxu0 0
        %1372 = vmatprep.subr.bf16.mxu0 0
        %1373 = vmatpush1.bf16.msra.mxu0 0
        %1374 = vmatprep.subr.bf16.mxu0 0
        %1375 = vmatpush1.bf16.msra.mxu0 0
        %1376 = vmatprep.subr.bf16.mxu0 0
        %1377 = vmatpush1.bf16.msra.mxu0 0
        %1378 = vmatprep.subr.bf16.mxu0 0
        %1379 = vmatpush1.bf16.msra.mxu0 0
        %1380 = vmatprep.subr.bf16.mxu0 0
        %1381 = vmatpush1.bf16.msra.mxu0 %v1364
        %1382 = vmatprep.subr.bf16.mxu0 0
        %1383 = vmatpush2.bf16.msra.mxu0 0
        %1384 = vmatprep.subr.bf16.mxu0 0
        %1385 = vmatpush2.bf16.msra.mxu0 0
        %1386 = vmatprep.subr.bf16.mxu0 0
        %1387 = vmatpush2.bf16.msra.mxu0 0
        %1388 = vmatprep.subr.bf16.mxu0 0
        %1389 = vmatpush2.bf16.msra.mxu0 0
        %1390 = vmatprep.subr.bf16.mxu0 0
        %1391 = vmatpush2.bf16.msra.mxu0 0
        %1392 = vmatprep.subr.bf16.mxu0 0
        %1393 = vmatpush2.bf16.msra.mxu0 0
        %1394 = vmatprep.subr.bf16.mxu0 0
        %1395 = vmatpush2.bf16.msra.mxu0 0
        %1396 = vmatprep.subr.bf16.mxu0 0
        %1397 = vmatpush2.bf16.msra.mxu0 0
        %1398 = vmatprep.mubr.bf16.mxu0 0
        %1399 = vmatmul.mubr.bf16.gmra.mxu0 %v1360
        %v1400 = vpop.f32.mrf.mxu0
        %v1401 = vadd.f32 0.0, %v1400
        %v1402 = vpop.f32.mrf.mxu0
        %v1403 = vpop.f32.mrf.mxu0
        %v1404 = vpop.f32.mrf.mxu0
        %1405 = vdwg.mxu0
        %v1406 = vpack.c.bf16 %v1401, %v1401
        %v1407 = vld [vmem:[%s8] sm:$0xf]
        %v1408 = vld [vmem:[%s8 + $0x4] sm:$0xf]
        %v1409 = vld [vmem:[%s8 + $0x8] sm:$0xf]
        %v1410 = vld [vmem:[%s8 + $0xc] sm:$0xf]
        %s1411 = scalar_lea.vmem [#allocation2], 1
        %v1412 = vld [vmem:[%s1411] sm:$0x1]
        %v1414 = vsel %vm1358, %v1412, 0
        %1416 = vmatprep.subr.bf16.mxu0 0
        %1417 = vmatpush1.bf16.msra.mxu0 0
        %1418 = vmatprep.subr.bf16.mxu0 0
        %1419 = vmatpush1.bf16.msra.mxu0 0
        %1420 = vmatprep.subr.bf16.mxu0 0
        %1421 = vmatpush1.bf16.msra.mxu0 0
        %1422 = vmatprep.subr.bf16.mxu0 0
        %1423 = vmatpush1.bf16.msra.mxu0 0
        %1424 = vmatprep.subr.bf16.mxu0 0
        %1425 = vmatpush1.bf16.msra.mxu0 0
        %1426 = vmatprep.subr.bf16.mxu0 0
        %1427 = vmatpush1.bf16.msra.mxu0 0
        %1428 = vmatprep.subr.bf16.mxu0 0
        %1429 = vmatpush1.bf16.msra.mxu0 0
        %1430 = vmatprep.subr.bf16.mxu0 0
        %1431 = vmatpush1.bf16.msra.mxu0 %v1364
        %1432 = vmatprep.subr.bf16.mxu0 0
        %1433 = vmatpush2.bf16.msra.mxu0 0
        %1434 = vmatprep.subr.bf16.mxu0 0
        %1435 = vmatpush2.bf16.msra.mxu0 0
        %1436 = vmatprep.subr.bf16.mxu0 0
        %1437 = vmatpush2.bf16.msra.mxu0 0
        %1438 = vmatprep.subr.bf16.mxu0 0
        %1439 = vmatpush2.bf16.msra.mxu0 0
        %1440 = vmatprep.subr.bf16.mxu0 0
        %1441 = vmatpush2.bf16.msra.mxu0 0
        %1442 = vmatprep.subr.bf16.mxu0 0
        %1443 = vmatpush2.bf16.msra.mxu0 0
        %1444 = vmatprep.subr.bf16.mxu0 0
        %1445 = vmatpush2.bf16.msra.mxu0 0
        %1446 = vmatprep.subr.bf16.mxu0 0
        %1447 = vmatpush2.bf16.msra.mxu0 0
        %1448 = vmatprep.mubr.bf16.mxu0 0
        %1449 = vmatmul.mubr.bf16.gmra.mxu0 %v1414
        %v1450 = vpop.f32.mrf.mxu0
        %v1451 = vadd.f32 0.0, %v1450
        %v1452 = vpop.f32.mrf.mxu0
        %v1453 = vpop.f32.mrf.mxu0
        %v1454 = vpop.f32.mrf.mxu0
        %1455 = vdwg.mxu0
        %v1456 = vpack.c.bf16 %v1451, %v1451
        %s1457 = scalar_lea.vmem %s8, 16
        %v1458 = vld [vmem:[%s1457] sm:$0xf]
        %v1459 = vld [vmem:[%s1457 + $0x4] sm:$0xf]
        %v1460 = vld [vmem:[%s1457 + $0x8] sm:$0xf]
        %v1461 = vld [vmem:[%s1457 + $0xc] sm:$0xf]
        %v1466 = vunpack.c.l.b16 %v1458
        %v1467 = vunpack.c.l.b16 %v1459
        %v1468 = vunpack.c.l.b16 %v1460
        %v1469 = vunpack.c.l.b16 %v1461
        %v1470 = vpack.c.b16 %v1467, %v1466
        %v1471 = vpack.c.b16 %v1469, %v1468
        %vm1474 = vcmask 261120
        %v1476 = vsel %vm1474, %v1456, 0
        %1478 = vmatprep.subr.bf16.mxu0 0
        %1479 = vmatpush1.bf16.msra.mxu0 0
        %1480 = vmatprep.subr.bf16.mxu0 0
        %1481 = vmatpush1.bf16.msra.mxu0 0
        %1482 = vmatprep.subr.bf16.mxu0 0
        %1483 = vmatpush1.bf16.msra.mxu0 0
        %1484 = vmatprep.subr.bf16.mxu0 0
        %1485 = vmatpush1.bf16.msra.mxu0 0
        %1486 = vmatprep.subr.bf16.mxu0 0
        %1487 = vmatpush1.bf16.msra.mxu0 0
        %1488 = vmatprep.subr.bf16.mxu0 0
        %1489 = vmatpush1.bf16.msra.mxu0 0
        %1490 = vmatprep.subr.bf16.mxu0 0
        %1491 = vmatpush1.bf16.msra.mxu0 %v1471
        %1492 = vmatprep.subr.bf16.mxu0 0
        %1493 = vmatpush1.bf16.msra.mxu0 %v1470
        %1494 = vmatprep.subr.bf16.mxu0 0
        %1495 = vmatpush2.bf16.msra.mxu0 0
        %1496 = vmatprep.subr.bf16.mxu0 0
        %1497 = vmatpush2.bf16.msra.mxu0 0
        %1498 = vmatprep.subr.bf16.mxu0 0
        %1499 = vmatpush2.bf16.msra.mxu0 0
        %1500 = vmatprep.subr.bf16.mxu0 0
        %1501 = vmatpush2.bf16.msra.mxu0 0
        %1502 = vmatprep.subr.bf16.mxu0 0
        %1503 = vmatpush2.bf16.msra.mxu0 0
        %1504 = vmatprep.subr.bf16.mxu0 0
        %1505 = vmatpush2.bf16.msra.mxu0 0
        %1506 = vmatprep.subr.bf16.mxu0 0
        %1507 = vmatpush2.bf16.msra.mxu0 0
        %1508 = vmatprep.subr.bf16.mxu0 0
        %1509 = vmatpush2.bf16.msra.mxu0 0
        %1510 = vmatprep.mubr.bf16.mxu0 0
        %1511 = vmatmul.mubr.bf16.gmra.mxu0 %v1476
        %v1512 = vpop.f32.mrf.mxu0
        %v1513 = vadd.f32 0.0, %v1512
        %v1514 = vpop.f32.mrf.mxu0
        %v1515 = vpop.f32.mrf.mxu0
        %v1516 = vpop.f32.mrf.mxu0
        %1517 = vdwg.mxu0
        %v1522 = vunpack.c.l.b16 %v1407
        %v1523 = vunpack.c.l.b16 %v1408
        %v1524 = vunpack.c.l.b16 %v1409
        %v1525 = vunpack.c.l.b16 %v1410
        %v1526 = vpack.c.b16 %v1523, %v1522
        %v1527 = vpack.c.b16 %v1525, %v1524
        %v1531 = vsel %vm1474, %v1406, 0
        %1533 = vmatprep.subr.bf16.mxu0 0
        %1534 = vmatpush1.bf16.msra.mxu0 0
        %1535 = vmatprep.subr.bf16.mxu0 0
        %1536 = vmatpush1.bf16.msra.mxu0 0
        %1537 = vmatprep.subr.bf16.mxu0 0
        %1538 = vmatpush1.bf16.msra.mxu0 0
        %1539 = vmatprep.subr.bf16.mxu0 0
        %1540 = vmatpush1.bf16.msra.mxu0 0
        %1541 = vmatprep.subr.bf16.mxu0 0
        %1542 = vmatpush1.bf16.msra.mxu0 0
        %1543 = vmatprep.subr.bf16.mxu0 0
        %1544 = vmatpush1.bf16.msra.mxu0 0
        %1545 = vmatprep.subr.bf16.mxu0 0
        %1546 = vmatpush1.bf16.msra.mxu0 %v1527
        %1547 = vmatprep.subr.bf16.mxu0 0
        %1548 = vmatpush1.bf16.msra.mxu0 %v1526
        %1549 = vmatprep.subr.bf16.mxu0 0
        %1550 = vmatpush2.bf16.msra.mxu0 0
        %1551 = vmatprep.subr.bf16.mxu0 0
        %1552 = vmatpush2.bf16.msra.mxu0 0
        %1553 = vmatprep.subr.bf16.mxu0 0
        %1554 = vmatpush2.bf16.msra.mxu0 0
        %1555 = vmatprep.subr.bf16.mxu0 0
        %1556 = vmatpush2.bf16.msra.mxu0 0
        %1557 = vmatprep.subr.bf16.mxu0 0
        %1558 = vmatpush2.bf16.msra.mxu0 0
        %1559 = vmatprep.subr.bf16.mxu0 0
        %1560 = vmatpush2.bf16.msra.mxu0 0
        %1561 = vmatprep.subr.bf16.mxu0 0
        %1562 = vmatpush2.bf16.msra.mxu0 0
        %1563 = vmatprep.subr.bf16.mxu0 0
        %1564 = vmatpush2.bf16.msra.mxu0 0
        %1565 = vmatprep.mubr.bf16.mxu0 0
        %1566 = vmatmul.mubr.bf16.gmra.mxu0 %v1531
        %v1567 = vpop.f32.mrf.mxu0
        %v1568 = vadd.f32 %v1513, %v1567
        %v1569 = vpop.f32.mrf.mxu0
        %v1570 = vpop.f32.mrf.mxu0
        %v1571 = vpop.f32.mrf.mxu0
        %1572 = vdwg.mxu0
        %s1573 = scalar_lea.vmem [#allocation2], 2
        %v1574 = vld [vmem:[%s1573] sm:$0x1]
        %v1576 = vsel %vm1358, %v1574, 0
        %1578 = vmatprep.subr.bf16.mxu0 0
        %1579 = vmatpush1.bf16.msra.mxu0 0
        %1580 = vmatprep.subr.bf16.mxu0 0
        %1581 = vmatpush1.bf16.msra.mxu0 0
        %1582 = vmatprep.subr.bf16.mxu0 0
        %1583 = vmatpush1.bf16.msra.mxu0 0
        %1584 = vmatprep.subr.bf16.mxu0 0
        %1585 = vmatpush1.bf16.msra.mxu0 0
        %1586 = vmatprep.subr.bf16.mxu0 0
        %1587 = vmatpush1.bf16.msra.mxu0 0
        %1588 = vmatprep.subr.bf16.mxu0 0
        %1589 = vmatpush1.bf16.msra.mxu0 0
        %1590 = vmatprep.subr.bf16.mxu0 0
        %1591 = vmatpush1.bf16.msra.mxu0 0
        %1592 = vmatprep.subr.bf16.mxu0 0
        %1593 = vmatpush1.bf16.msra.mxu0 %v1364
        %1594 = vmatprep.subr.bf16.mxu0 0
        %1595 = vmatpush2.bf16.msra.mxu0 0
        %1596 = vmatprep.subr.bf16.mxu0 0
        %1597 = vmatpush2.bf16.msra.mxu0 0
        %1598 = vmatprep.subr.bf16.mxu0 0
        %1599 = vmatpush2.bf16.msra.mxu0 0
        %1600 = vmatprep.subr.bf16.mxu0 0
        %1601 = vmatpush2.bf16.msra.mxu0 0
        %1602 = vmatprep.subr.bf16.mxu0 0
        %1603 = vmatpush2.bf16.msra.mxu0 0
        %1604 = vmatprep.subr.bf16.mxu0 0
        %1605 = vmatpush2.bf16.msra.mxu0 0
        %1606 = vmatprep.subr.bf16.mxu0 0
        %1607 = vmatpush2.bf16.msra.mxu0 0
        %1608 = vmatprep.subr.bf16.mxu0 0
        %1609 = vmatpush2.bf16.msra.mxu0 0
        %1610 = vmatprep.mubr.bf16.mxu0 0
        %1611 = vmatmul.mubr.bf16.gmra.mxu0 %v1576
        %v1612 = vpop.f32.mrf.mxu0
        %v1613 = vadd.f32 0.0, %v1612
        %v1614 = vpop.f32.mrf.mxu0
        %v1615 = vpop.f32.mrf.mxu0
        %v1616 = vpop.f32.mrf.mxu0
        %1617 = vdwg.mxu0
        %v1618 = vpack.c.bf16 %v1613, %v1613
        %s1619 = scalar_lea.vmem %s8, 32
        %v1620 = vld [vmem:[%s1619] sm:$0xf]
        %v1621 = vld [vmem:[%s1619 + $0x4] sm:$0xf]
        %v1622 = vld [vmem:[%s1619 + $0x8] sm:$0xf]
        %v1623 = vld [vmem:[%s1619 + $0xc] sm:$0xf]
        %v1628 = vunpack.c.l.b16 %v1620
        %v1629 = vunpack.c.l.b16 %v1621
        %v1630 = vunpack.c.l.b16 %v1622
        %v1631 = vunpack.c.l.b16 %v1623
        %v1632 = vpack.c.b16 %v1629, %v1628
        %v1633 = vpack.c.b16 %v1631, %v1630
        %v1637 = vsel %vm1474, %v1618, 0
        %1639 = vmatprep.subr.bf16.mxu0 0
        %1640 = vmatpush1.bf16.msra.mxu0 0
        %1641 = vmatprep.subr.bf16.mxu0 0
        %1642 = vmatpush1.bf16.msra.mxu0 0
        %1643 = vmatprep.subr.bf16.mxu0 0
        %1644 = vmatpush1.bf16.msra.mxu0 0
        %1645 = vmatprep.subr.bf16.mxu0 0
        %1646 = vmatpush1.bf16.msra.mxu0 0
        %1647 = vmatprep.subr.bf16.mxu0 0
        %1648 = vmatpush1.bf16.msra.mxu0 0
        %1649 = vmatprep.subr.bf16.mxu0 0
        %1650 = vmatpush1.bf16.msra.mxu0 0
        %1651 = vmatprep.subr.bf16.mxu0 0
        %1652 = vmatpush1.bf16.msra.mxu0 %v1633
        %1653 = vmatprep.subr.bf16.mxu0 0
        %1654 = vmatpush1.bf16.msra.mxu0 %v1632
        %1655 = vmatprep.subr.bf16.mxu0 0
        %1656 = vmatpush2.bf16.msra.mxu0 0
        %1657 = vmatprep.subr.bf16.mxu0 0
        %1658 = vmatpush2.bf16.msra.mxu0 0
        %1659 = vmatprep.subr.bf16.mxu0 0
        %1660 = vmatpush2.bf16.msra.mxu0 0
        %1661 = vmatprep.subr.bf16.mxu0 0
        %1662 = vmatpush2.bf16.msra.mxu0 0
        %1663 = vmatprep.subr.bf16.mxu0 0
        %1664 = vmatpush2.bf16.msra.mxu0 0
        %1665 = vmatprep.subr.bf16.mxu0 0
        %1666 = vmatpush2.bf16.msra.mxu0 0
        %1667 = vmatprep.subr.bf16.mxu0 0
        %1668 = vmatpush2.bf16.msra.mxu0 0
        %1669 = vmatprep.subr.bf16.mxu0 0
        %1670 = vmatpush2.bf16.msra.mxu0 0
        %1671 = vmatprep.mubr.bf16.mxu0 0
        %1672 = vmatmul.mubr.bf16.gmra.mxu0 %v1637
        %v1673 = vpop.f32.mrf.mxu0
        %v1674 = vadd.f32 0.0, %v1673
        %v1675 = vpop.f32.mrf.mxu0
        %v1676 = vpop.f32.mrf.mxu0
        %v1677 = vpop.f32.mrf.mxu0
        %1678 = vdwg.mxu0
        %v1679 = vadd.f32 %v1568, %v1674
        %s1680 = scalar_lea.vmem [#allocation2], 3
        %v1681 = vld [vmem:[%s1680] sm:$0x1]
        %v1683 = vsel %vm1358, %v1681, 0
        %1685 = vmatprep.subr.bf16.mxu0 0
        %1686 = vmatpush1.bf16.msra.mxu0 0
        %1687 = vmatprep.subr.bf16.mxu0 0
        %1688 = vmatpush1.bf16.msra.mxu0 0
        %1689 = vmatprep.subr.bf16.mxu0 0
        %1690 = vmatpush1.bf16.msra.mxu0 0
        %1691 = vmatprep.subr.bf16.mxu0 0
        %1692 = vmatpush1.bf16.msra.mxu0 0
        %1693 = vmatprep.subr.bf16.mxu0 0
        %1694 = vmatpush1.bf16.msra.mxu0 0
        %1695 = vmatprep.subr.bf16.mxu0 0
        %1696 = vmatpush1.bf16.msra.mxu0 0
        %1697 = vmatprep.subr.bf16.mxu0 0
        %1698 = vmatpush1.bf16.msra.mxu0 0
        %1699 = vmatprep.subr.bf16.mxu0 0
        %1700 = vmatpush1.bf16.msra.mxu0 %v1364
        %1701 = vmatprep.subr.bf16.mxu0 0
        %1702 = vmatpush2.bf16.msra.mxu0 0
        %1703 = vmatprep.subr.bf16.mxu0 0
        %1704 = vmatpush2.bf16.msra.mxu0 0
        %1705 = vmatprep.subr.bf16.mxu0 0
        %1706 = vmatpush2.bf16.msra.mxu0 0
        %1707 = vmatprep.subr.bf16.mxu0 0
        %1708 = vmatpush2.bf16.msra.mxu0 0
        %1709 = vmatprep.subr.bf16.mxu0 0
        %1710 = vmatpush2.bf16.msra.mxu0 0
        %1711 = vmatprep.subr.bf16.mxu0 0
        %1712 = vmatpush2.bf16.msra.mxu0 0
        %1713 = vmatprep.subr.bf16.mxu0 0
        %1714 = vmatpush2.bf16.msra.mxu0 0
        %1715 = vmatprep.subr.bf16.mxu0 0
        %1716 = vmatpush2.bf16.msra.mxu0 0
        %1717 = vmatprep.mubr.bf16.mxu0 0
        %1718 = vmatmul.mubr.bf16.gmra.mxu0 %v1683
        %v1719 = vpop.f32.mrf.mxu0
        %v1720 = vadd.f32 0.0, %v1719
        %v1721 = vpop.f32.mrf.mxu0
        %v1722 = vpop.f32.mrf.mxu0
        %v1723 = vpop.f32.mrf.mxu0
        %1724 = vdwg.mxu0
        %v1725 = vpack.c.bf16 %v1720, %v1720
        %s1726 = scalar_lea.vmem %s8, 48
        %v1727 = vld [vmem:[%s1726] sm:$0xf]
        %v1728 = vld [vmem:[%s1726 + $0x4] sm:$0xf]
        %v1729 = vld [vmem:[%s1726 + $0x8] sm:$0xf]
        %v1730 = vld [vmem:[%s1726 + $0xc] sm:$0xf]
        %v1735 = vunpack.c.l.b16 %v1727
        %v1736 = vunpack.c.l.b16 %v1728
        %v1737 = vunpack.c.l.b16 %v1729
        %v1738 = vunpack.c.l.b16 %v1730
        %v1739 = vpack.c.b16 %v1736, %v1735
        %v1740 = vpack.c.b16 %v1738, %v1737
        %v1744 = vsel %vm1474, %v1725, 0
        %1746 = vmatprep.subr.bf16.mxu0 0
        %1747 = vmatpush1.bf16.msra.mxu0 0
        %1748 = vmatprep.subr.bf16.mxu0 0
        %1749 = vmatpush1.bf16.msra.mxu0 0
        %1750 = vmatprep.subr.bf16.mxu0 0
        %1751 = vmatpush1.bf16.msra.mxu0 0
        %1752 = vmatprep.subr.bf16.mxu0 0
        %1753 = vmatpush1.bf16.msra.mxu0 0
        %1754 = vmatprep.subr.bf16.mxu0 0
        %1755 = vmatpush1.bf16.msra.mxu0 0
        %1756 = vmatprep.subr.bf16.mxu0 0
        %1757 = vmatpush1.bf16.msra.mxu0 0
        %1758 = vmatprep.subr.bf16.mxu0 0
        %1759 = vmatpush1.bf16.msra.mxu0 %v1740
        %1760 = vmatprep.subr.bf16.mxu0 0
        %1761 = vmatpush1.bf16.msra.mxu0 %v1739
        %1762 = vmatprep.subr.bf16.mxu0 0
        %1763 = vmatpush2.bf16.msra.mxu0 0
        %1764 = vmatprep.subr.bf16.mxu0 0
        %1765 = vmatpush2.bf16.msra.mxu0 0
        %1766 = vmatprep.subr.bf16.mxu0 0
        %1767 = vmatpush2.bf16.msra.mxu0 0
        %1768 = vmatprep.subr.bf16.mxu0 0
        %1769 = vmatpush2.bf16.msra.mxu0 0
        %1770 = vmatprep.subr.bf16.mxu0 0
        %1771 = vmatpush2.bf16.msra.mxu0 0
        %1772 = vmatprep.subr.bf16.mxu0 0
        %1773 = vmatpush2.bf16.msra.mxu0 0
        %1774 = vmatprep.subr.bf16.mxu0 0
        %1775 = vmatpush2.bf16.msra.mxu0 0
        %1776 = vmatprep.subr.bf16.mxu0 0
        %1777 = vmatpush2.bf16.msra.mxu0 0
        %1778 = vmatprep.mubr.bf16.mxu0 0
        %1779 = vmatmul.mubr.bf16.gmra.mxu0 %v1744
        %v1780 = vpop.f32.mrf.mxu0
        %v1781 = vadd.f32 0.0, %v1780
        %v1782 = vpop.f32.mrf.mxu0
        %v1783 = vpop.f32.mrf.mxu0
        %v1784 = vpop.f32.mrf.mxu0
        %1785 = vdwg.mxu0
        %v1786 = vadd.f32 %v1679, %v1781
        %v1787 = vld [vmem:[%s9] sm:$0x1]
        %v1788 = vadd.f32 %v1786, %v1787
        %1789 = vst [vmem:[%s366] sm:$0x1] %v1788
        %s1790 = sand.u32 %s248, 1
        %s1791 = scalar_lea.sflag [#allocation4], %s1790
        %s1792 = sand.u32 %s248, 1
        %s1793 = scalar_lea.vmem [#allocation5], %s1792
        // Predicated region
        $region65: #{_lambda_.1} parent=59 // pred_check
          %p1794 = pneg %p258
        $region66: #{_lambda_.1} parent=59 // pred_check_branch
          %1796 = sbr.rel (%p1794) target = $region68
        $region67: #{_lambda_.1} parent=59 // pred_region
          %s1798 = ssub.s32 16, 16
          %1799 = vsyncadd %s1791, %s1798
          %s1800 = smul.addr %s25, 16
          %s1801 = scalar_lea.hbm %s10, %s1800
          %s1803 = sshll.u32 %s1793, 4
          %s1804 = int_to_ptr.vmem [resolvable:$true] %s1803
          %1806 = dma.vmem_to_hbm [thread:$0]  %s1804, 16, %s1801, %s1791
        $region68: #{_lambda_.1} parent=59 // pred_fallthru
          _
      $region60: #{_lambda_.1} parent=5 // pred_fallthru
        _
      %p1807 = scmp.le.s32.totalorder 2, %s20
      // Predicated region
      $region69: #{_lambda_.1} parent=5 // pred_check
        %p1808 = pneg %p1807
      $region70: #{_lambda_.1} parent=5 // pred_check_branch
        %1810 = sbr.rel (%p1808) target = $region72
      $region71: #{_lambda_.1} parent=5 // pred_region
        %s1811 = ssub.s32 %s20, 2
        // Predicated region
        $region73: #{_lambda_.1} parent=71 // pred_check
          %p1812 = pneg %p264
        $region74: #{_lambda_.1} parent=71 // pred_check_branch
          %1814 = sbr.rel (%p1812) target = $region76
        $region75: #{_lambda_.1} parent=71 // pred_region
          %s1815 = sand.u32 %s249, 1
          %s1816 = scalar_lea.sflag [#allocation4], %s1815
          %s1817 = sand.u32 %s249, 1
          %s1818 = scalar_lea.vmem [#allocation5], %s1817
          %1819 = dma.done %s1816, 16
        $region76: #{_lambda_.1} parent=71 // pred_fallthru
          _
      $region72: #{_lambda_.1} parent=5 // pred_fallthru
        _
    $region6: #{_lambda_.1} parent=1 // loop_footer
      %s24 = sadd.s32 1, %s20
    $region7: #{_lambda_.1} parent=1 // loop_footer_branch
      %19 = sbr.rel target = $region3
    $region8: #{_lambda_.1} parent=1 // loop_exit
      _
    %1820 = vsyncpa [#allocation3], 1
    %s1821 = scalar_lea.sflag [#allocation3], 1
    %1822 = vsyncpa %s1821, 1
    %1823 = vsyncpa [#allocation4], 1
    %s1824 = scalar_lea.sflag [#allocation4], 1
    %1825 = vsyncpa %s1824, 1

</llo_original>
